<compile_context>
chip_gen: v6e
topology: v6e:2x2x1
jax: 0.10.0
libtpu: 0.0.40
codegen_flags: <defaults>
</compile_context>

<pallas_src>
import functools

import numpy as np
import jax
import jax.numpy as jnp
from jax import lax
from jax.experimental import pallas as pl
from jax.experimental.pallas import tpu as pltpu

_G = 128   # lane-group width: input row groups, conv1/conv2 output column groups
_KH = 5    # both convs are 5x5


# ------------------------------ Pallas kernel -------------------------------

def _lenet_kernel(x_ref, w1_ref, b1_ref, w2_ref, b2_ref,
                  wf1_ref, bf1_ref, wf2_ref, bf2_ref, wf3_ref, bf3_ref,
                  o_ref, *, bt):
    """Whole LeNet forward for `bt` images; intermediates never leave VMEM.

    x_ref : (bt, 4, 8, 128) bf16  -- image rows split by (h % 4), cols = w*3+ci (96 used)
    w1/w2 : (640, 256) bf16       -- banded conv weights: rows (kh, w, ci) grouped by 128,
                                     cols (dw, ow2, co) grouped by 128 (pool-in-width folded in)
    wf1   : (5, 128, 128) bf16    -- fc1 split per pooled row (torch flatten order folded in)
    wf2/3 : (128, 128) bf16, biases (1, 128) f32
    o_ref : (bt, 1, 128) f32      -- lane-dense logits (first 10 valid)
    """
    w1 = w1_ref[...]
    w2 = w2_ref[...]
    wf2 = wf2_ref[...]
    wf3 = wf3_ref[...]
    b1 = b1_ref[...]
    b2 = b2_ref[...]
    bf1 = bf1_ref[...]
    bf2 = bf2_ref[...]
    bf3 = bf3_ref[...]

    def conv_relu_pool(pieces, w, bias):
        # pieces: 6 row-slices of shape (rows, 128); lane-group s holds the input
        # rows needed at height offset s above each pooled output row.
        L = jnp.concatenate(pieces, axis=-1).astype(jnp.bfloat16)      # (rows, 768)
        k = w.shape[0]                                                 # 640 = 5 * 128
        y0 = jnp.dot(L[:, :k], w, preferred_element_type=jnp.float32)        # dh = 0
        y1 = jnp.dot(L[:, _G:_G + k], w, preferred_element_type=jnp.float32)  # dh = 1
        y = jnp.maximum(y0, y1)                  # max over pool-row offset dh
        y = jnp.maximum(y[:, :_G], y[:, _G:])    # max over pool-col offset dw
        return jnp.maximum(y + bias, 0.0)        # shared bias + ReLU, hoisted after max

    for r in range(bt):
        xi = x_ref[r].astype(jnp.float32)        # (4, 8, 128): [h%4, h//4, w*3+ci]
        x0, x1, x2, x3 = xi[0], xi[1], xi[2], xi[3]

        # conv1 + ReLU + 2x2 pool, produced directly split into even/odd pooled rows
        p1e = conv_relu_pool([x0[0:7], x1[0:7], x2[0:7], x3[0:7], x0[1:8], x1[1:8]],
                             w1, b1)             # (7, 128): pooled rows 0,2,...,12
        p1o = conv_relu_pool([x2[0:7], x3[0:7], x0[1:8], x1[1:8], x2[1:8], x3[1:8]],
                             w1, b1)             # (7, 128): pooled rows 1,3,...,13

        # conv2 + ReLU + 2x2 pool -> (5, 128), cols = ow4*16 + c2 (80 used, rest 0)
        p2 = conv_relu_pool([p1e[0:5], p1o[0:5], p1e[1:6], p1o[1:6], p1e[2:7], p1o[2:7]],
                            w2, b2)

        # fc1 (contract the 5 pooled rows via 5 matvecs) + ReLU -> fc2 + ReLU -> fc3
        h = bf1
        for q in range(5):
            h = h + jnp.dot(p2[q:q + 1, :].astype(jnp.bfloat16), wf1_ref[q],
                            preferred_element_type=jnp.float32)
        h = jnp.maximum(h, 0.0).astype(jnp.bfloat16)                         # (1, 128)
        h = jnp.maximum(jnp.dot(h, wf2, preferred_element_type=jnp.float32) + bf2, 0.0)
        h = h.astype(jnp.bfloat16)
        o_ref[r] = jnp.dot(h, wf3, preferred_element_type=jnp.float32) + bf3


def _pick_batch_tile(batch):
    # Keep the grid length >= 2 so both v7x TensorCores get work; unroll at most
    # 8 images per grid step for larger batches.
    for bt in (8, 4, 2):
        if batch % bt == 0 and batch // bt >= 2:
            return bt
    return 1


def _lenet_pallas(x_phased, pk, bt):
    batch = x_phased.shape[0]
    grid = (batch // bt,)
    per_img_flops = 2 * (4 * 7 * 640 * 256 + 2 * 5 * 640 * 256
                         + 5 * 128 * 128 + 2 * 128 * 128)
    weight_bytes = 2 * (2 * 640 * 256 + 5 * 128 * 128 + 2 * 128 * 128) + 4 * 5 * 128
    bytes_accessed = batch * (4 * 8 * _G * 2 + _G * 4) + weight_bytes
    return pl.pallas_call(
        functools.partial(_lenet_kernel, bt=bt),
        out_shape=jax.ShapeDtypeStruct((batch, 1, _G), jnp.float32),
        grid=grid,
        in_specs=[
            pl.BlockSpec((bt, 4, 8, _G), lambda i: (i, 0, 0, 0)),
            pl.BlockSpec((_KH * _G, 2 * _G), lambda i: (0, 0)),
            pl.BlockSpec((1, _G), lambda i: (0, 0)),
            pl.BlockSpec((_KH * _G, 2 * _G), lambda i: (0, 0)),
            pl.BlockSpec((1, _G), lambda i: (0, 0)),
            pl.BlockSpec((5, _G, _G), lambda i: (0, 0, 0)),
            pl.BlockSpec((1, _G), lambda i: (0, 0)),
            pl.BlockSpec((_G, _G), lambda i: (0, 0)),
            pl.BlockSpec((1, _G), lambda i: (0, 0)),
            pl.BlockSpec((_G, _G), lambda i: (0, 0)),
            pl.BlockSpec((1, _G), lambda i: (0, 0)),
        ],
        out_specs=pl.BlockSpec((bt, 1, _G), lambda i: (i, 0, 0)),
        compiler_params=pltpu.CompilerParams(
            dimension_semantics=("parallel",),
            vmem_limit_bytes=32 * 1024 * 1024),
        cost_estimate=pl.CostEstimate(flops=per_img_flops * batch,
                                      transcendentals=0,
                                      bytes_accessed=bytes_accessed),
    )(x_phased, pk["w1"], pk["b1"], pk["w2"], pk["b2"],
      pk["wf1"], pk["bf1"], pk["wf2"], pk["bf2"], pk["wf3"], pk["bf3"])


# ------------------------------ parameters ----------------------------------

def init_params(key):
    """PyTorch-layout parameters, exactly as the nn.Module would hold them."""
    ks = jax.random.split(key, 10)
    s = 0.1
    return {
        "conv1_w": jax.random.normal(ks[0], (6, 3, 5, 5), jnp.float32) * s,
        "conv1_b": jax.random.normal(ks[1], (6,), jnp.float32) * s,
        "conv2_w": jax.random.normal(ks[2], (16, 6, 5, 5), jnp.float32) * s,
        "conv2_b": jax.random.normal(ks[3], (16,), jnp.float32) * s,
        "fc1_w": jax.random.normal(ks[4], (120, 400), jnp.float32) * s,
        "fc1_b": jax.random.normal(ks[5], (120,), jnp.float32) * s,
        "fc2_w": jax.random.normal(ks[6], (84, 120), jnp.float32) * s,
        "fc2_b": jax.random.normal(ks[7], (84,), jnp.float32) * s,
        "fc3_w": jax.random.normal(ks[8], (10, 84), jnp.float32) * s,
        "fc3_b": jax.random.normal(ks[9], (10,), jnp.float32) * s,
    }


def pack_params(p):
    """One-time re-layout of PyTorch-shaped params into kernel-ready operands."""

    def banded_pooled_conv(wconv, win):
        # Rows: kh*128 + w*Cin + ci   (w = absolute input column)
        # Cols: dw*128 + ow2*Cout + co (ow2 = pooled output column, dw = pool pos)
        w = np.asarray(wconv, np.float32)                 # (Cout, Cin, 5, 5)
        cout, cin, kh_n, kw_n = w.shape
        wout2 = (win - kw_n + 1) // 2
        mat = np.zeros((kh_n * _G, 2 * _G), np.float32)
        for kh in range(kh_n):
            for dw in range(2):
                for ow2 in range(wout2):
                    for kw in range(kw_n):
                        w_abs = 2 * ow2 + dw + kw
                        r0 = kh * _G + w_abs * cin
                        c0 = dw * _G + ow2 * cout
                        mat[r0:r0 + cin, c0:c0 + cout] = w[:, :, kh, kw].T
        return jnp.asarray(mat, jnp.bfloat16)

    def tiled_bias(b, reps):
        out = np.zeros((1, _G), np.float32)
        b = np.asarray(b, np.float32)
        out[0, :reps * b.shape[0]] = np.tile(b, reps)
        return jnp.asarray(out)

    def padded_bias(b):
        out = np.zeros((1, _G), np.float32)
        b = np.asarray(b, np.float32)
        out[0, :b.shape[0]] = b
        return jnp.asarray(out)

    # fc1 with torch's NCHW .view(-1, 400) permutation folded in, split per pooled
    # output row (oh4) so the kernel contracts the rows with 5 matvecs.
    f1 = np.asarray(p["fc1_w"], np.float32)               # (120, 400): idx = c*25 + h*5 + w
    wf1 = np.zeros((5, _G, _G), np.float32)
    for h in range(5):
        for w_ in range(5):
            for c in range(16):
                wf1[h, w_ * 16 + c, :120] = f1[:, c * 25 + h * 5 + w_]

    wf2 = np.zeros((_G, _G), np.float32)
    wf2[:120, :84] = np.asarray(p["fc2_w"], np.float32).T
    wf3 = np.zeros((_G, _G), np.float32)
    wf3[:84, :10] = np.asarray(p["fc3_w"], np.float32).T

    return {
        "w1": banded_pooled_conv(p["conv1_w"], 32),
        "b1": tiled_bias(p["conv1_b"], 14),
        "w2": banded_pooled_conv(p["conv2_w"], 14),
        "b2": tiled_bias(p["conv2_b"], 5),
        "wf1": jnp.asarray(wf1, jnp.bfloat16),
        "bf1": padded_bias(p["fc1_b"]),
        "wf2": jnp.asarray(wf2, jnp.bfloat16),
        "bf2": padded_bias(p["fc2_b"]),
        "wf3": jnp.asarray(wf3, jnp.bfloat16),
        "bf3": padded_bias(p["fc3_b"]),
    }


# ------------------------------ forward pass ---------------------------------

@jax.jit
def net_forward(x_nchw, packed):
    batch = x_nchw.shape[0]
    # NCHW -> rows = h, cols = (w, ci); zero-pad cols to 128; split rows by h mod 4.
    x = jnp.transpose(x_nchw, (0, 2, 3, 1)).reshape(batch, 32, 96)
    x = jnp.pad(x, ((0, 0), (0, 0), (0, _G - 96)))
    x = x.reshape(batch, 8, 4, _G).transpose(0, 2, 1, 3).astype(jnp.bfloat16)
    bt = _pick_batch_tile(batch)
    out = _lenet_pallas(x, packed, bt)                    # (B, 1, 128) lane-dense
    return out.reshape(batch, _G)[:, :10]


# ------------------------------ reference ------------------------------------

def reference_forward(x_nchw, params):
    """Pure-JAX reference mirroring the PyTorch forward (for validation)."""
    def conv(x, w, b):
        y = lax.conv_general_dilated(x, w, window_strides=(1, 1), padding="VALID",
                                     dimension_numbers=("NCHW", "OIHW", "NCHW"))
        return y + b.reshape(1, -1, 1, 1)

    def pool2(x):
        b, c, h, w = x.shape
        return x.reshape(b, c, h // 2, 2, w // 2, 2).max(axis=(3, 5))

    x = pool2(jnp.maximum(conv(x_nchw, params["conv1_w"], params["conv1_b"]), 0.0))
    x = pool2(jnp.maximum(conv(x, params["conv2_w"], params["conv2_b"]), 0.0))
    x = x.reshape(x.shape[0], -1)                         # NCHW .view(-1, 400)
    x = jnp.maximum(x @ params["fc1_w"].T + params["fc1_b"], 0.0)
    x = jnp.maximum(x @ params["fc2_w"].T + params["fc2_b"], 0.0)
    return x @ params["fc3_w"].T + params["fc3_b"]


if __name__ == "__main__":
    key = jax.random.PRNGKey(0)
    k_x, k_p = jax.random.split(key)
    # Forward implies a 32x32 input (16*5*5 flatten after two 5x5 convs + pools).
    x = jax.random.normal(k_x, (2, 3, 32, 32), jnp.float32)
    params = init_params(k_p)
    packed = pack_params(params)          # one-time weight re-layout (outside jit)

    out = net_forward(x, packed)
    jax.block_until_ready(out)
    assert out.shape == (2, 10) and out.dtype == jnp.float32

    ref = reference_forward(x, params)
    max_err = float(jnp.max(jnp.abs(out - ref)))
    # bf16 weights/activations end-to-end vs f32 reference.
    assert jnp.allclose(out, ref, rtol=5e-2, atol=7.5e-2), f"max abs err {max_err}"

    print("KERNEL_OK")
</pallas_src>

<mosaic_0001>
module attributes {stable_mosaic.version = 11 : i64} {
  func.func @_lenet_kernel(%arg0: i32, %arg1: memref<1x4x8x128xbf16, #tpu.memory_space<vmem>>, %arg2: memref<640x256xbf16, #tpu.memory_space<vmem>>, %arg3: memref<1x128xf32, #tpu.memory_space<vmem>>, %arg4: memref<640x256xbf16, #tpu.memory_space<vmem>>, %arg5: memref<1x128xf32, #tpu.memory_space<vmem>>, %arg6: memref<5x128x128xbf16, #tpu.memory_space<vmem>>, %arg7: memref<1x128xf32, #tpu.memory_space<vmem>>, %arg8: memref<128x128xbf16, #tpu.memory_space<vmem>>, %arg9: memref<1x128xf32, #tpu.memory_space<vmem>>, %arg10: memref<128x128xbf16, #tpu.memory_space<vmem>>, %arg11: memref<1x128xf32, #tpu.memory_space<vmem>>, %arg12: memref<1x1x128xf32, #tpu.memory_space<vmem>>) attributes {dimension_semantics = [#tpu.dimension_semantics<parallel>], iteration_bounds = array<i64: 2>, scalar_prefetch = 0 : i64, scratch_operands = 0 : i64, tpu.core_type = #tpu.core_type<tc>, window_params = [{transform_indices = @transform_0, window_bounds = array<i64: 1, 4, 8, 128>}, {pipeline_mode = #tpu.pipeline_mode<synchronous>, transform_indices = @transform_1, window_bounds = array<i64: 640, 256>}, {pipeline_mode = #tpu.pipeline_mode<synchronous>, transform_indices = @transform_2, window_bounds = array<i64: 1, 128>}, {pipeline_mode = #tpu.pipeline_mode<synchronous>, transform_indices = @transform_3, window_bounds = array<i64: 640, 256>}, {pipeline_mode = #tpu.pipeline_mode<synchronous>, transform_indices = @transform_4, window_bounds = array<i64: 1, 128>}, {pipeline_mode = #tpu.pipeline_mode<synchronous>, transform_indices = @transform_5, window_bounds = array<i64: 5, 128, 128>}, {pipeline_mode = #tpu.pipeline_mode<synchronous>, transform_indices = @transform_6, window_bounds = array<i64: 1, 128>}, {pipeline_mode = #tpu.pipeline_mode<synchronous>, transform_indices = @transform_7, window_bounds = array<i64: 128, 128>}, {pipeline_mode = #tpu.pipeline_mode<synchronous>, transform_indices = @transform_8, window_bounds = array<i64: 1, 128>}, {pipeline_mode = #tpu.pipeline_mode<synchronous>, transform_indices = @transform_9, window_bounds = array<i64: 128, 128>}, {pipeline_mode = #tpu.pipeline_mode<synchronous>, transform_indices = @transform_10, window_bounds = array<i64: 1, 128>}, {transform_indices = @transform_11, window_bounds = array<i64: 1, 1, 128>}]} {
    %c0 = arith.constant 0 : index
    %c0_0 = arith.constant 0 : index
    %0 = vector.load %arg2[%c0, %c0_0] : memref<640x256xbf16, #tpu.memory_space<vmem>>, vector<640x256xbf16>
    %c0_1 = arith.constant 0 : index
    %c0_2 = arith.constant 0 : index
    %1 = vector.load %arg4[%c0_1, %c0_2] : memref<640x256xbf16, #tpu.memory_space<vmem>>, vector<640x256xbf16>
    %c0_3 = arith.constant 0 : index
    %c0_4 = arith.constant 0 : index
    %2 = vector.load %arg8[%c0_3, %c0_4] : memref<128x128xbf16, #tpu.memory_space<vmem>>, vector<128x128xbf16>
    %c0_5 = arith.constant 0 : index
    %c0_6 = arith.constant 0 : index
    %3 = vector.load %arg10[%c0_5, %c0_6] : memref<128x128xbf16, #tpu.memory_space<vmem>>, vector<128x128xbf16>
    %c0_7 = arith.constant 0 : index
    %c0_8 = arith.constant 0 : index
    %4 = vector.load %arg3[%c0_7, %c0_8] : memref<1x128xf32, #tpu.memory_space<vmem>>, vector<1x128xf32>
    %c0_9 = arith.constant 0 : index
    %c0_10 = arith.constant 0 : index
    %5 = vector.load %arg5[%c0_9, %c0_10] : memref<1x128xf32, #tpu.memory_space<vmem>>, vector<1x128xf32>
    %c0_11 = arith.constant 0 : index
    %c0_12 = arith.constant 0 : index
    %6 = vector.load %arg7[%c0_11, %c0_12] : memref<1x128xf32, #tpu.memory_space<vmem>>, vector<1x128xf32>
    %c0_13 = arith.constant 0 : index
    %c0_14 = arith.constant 0 : index
    %7 = vector.load %arg9[%c0_13, %c0_14] : memref<1x128xf32, #tpu.memory_space<vmem>>, vector<1x128xf32>
    %c0_15 = arith.constant 0 : index
    %c0_16 = arith.constant 0 : index
    %8 = vector.load %arg11[%c0_15, %c0_16] : memref<1x128xf32, #tpu.memory_space<vmem>>, vector<1x128xf32>
    %c0_17 = arith.constant 0 : index
    %c0_18 = arith.constant 0 : index
    %c0_19 = arith.constant 0 : index
    %c0_20 = arith.constant 0 : index
    %9 = vector.load %arg1[%c0_17, %c0_18, %c0_19, %c0_20] : memref<1x4x8x128xbf16, #tpu.memory_space<vmem>>, vector<1x4x8x128xbf16>
    %10 = vector.shape_cast %9 : vector<1x4x8x128xbf16> to vector<4x8x128xbf16>
    %11 = arith.extf %10 : vector<4x8x128xbf16> to vector<4x8x128xf32>
    %12 = vector.extract_strided_slice %11 {offsets = [0, 0, 0], sizes = [1, 8, 128], strides = [1, 1, 1]} : vector<4x8x128xf32> to vector<1x8x128xf32>
    %13 = vector.shape_cast %12 : vector<1x8x128xf32> to vector<8x128xf32>
    %14 = vector.extract_strided_slice %11 {offsets = [1, 0, 0], sizes = [1, 8, 128], strides = [1, 1, 1]} : vector<4x8x128xf32> to vector<1x8x128xf32>
    %15 = vector.shape_cast %14 : vector<1x8x128xf32> to vector<8x128xf32>
    %16 = vector.extract_strided_slice %11 {offsets = [2, 0, 0], sizes = [1, 8, 128], strides = [1, 1, 1]} : vector<4x8x128xf32> to vector<1x8x128xf32>
    %17 = vector.shape_cast %16 : vector<1x8x128xf32> to vector<8x128xf32>
    %18 = vector.extract_strided_slice %11 {offsets = [3, 0, 0], sizes = [1, 8, 128], strides = [1, 1, 1]} : vector<4x8x128xf32> to vector<1x8x128xf32>
    %19 = vector.shape_cast %18 : vector<1x8x128xf32> to vector<8x128xf32>
    %20 = vector.extract_strided_slice %13 {offsets = [0, 0], sizes = [7, 128], strides = [1, 1]} : vector<8x128xf32> to vector<7x128xf32>
    %21 = vector.extract_strided_slice %15 {offsets = [0, 0], sizes = [7, 128], strides = [1, 1]} : vector<8x128xf32> to vector<7x128xf32>
    %22 = vector.extract_strided_slice %17 {offsets = [0, 0], sizes = [7, 128], strides = [1, 1]} : vector<8x128xf32> to vector<7x128xf32>
    %23 = vector.extract_strided_slice %19 {offsets = [0, 0], sizes = [7, 128], strides = [1, 1]} : vector<8x128xf32> to vector<7x128xf32>
    %24 = vector.extract_strided_slice %13 {offsets = [1, 0], sizes = [7, 128], strides = [1, 1]} : vector<8x128xf32> to vector<7x128xf32>
    %25 = vector.extract_strided_slice %15 {offsets = [1, 0], sizes = [7, 128], strides = [1, 1]} : vector<8x128xf32> to vector<7x128xf32>
    %26 = tpu.concatenate %20, %21, %22, %23, %24, %25 in 1 : vector<7x128xf32>, vector<7x128xf32>, vector<7x128xf32>, vector<7x128xf32>, vector<7x128xf32>, vector<7x128xf32> -> vector<7x768xf32>
    %27 = arith.truncf %26 : vector<7x768xf32> to vector<7x768xbf16>
    %28 = vector.extract_strided_slice %27 {offsets = [0, 0], sizes = [7, 640], strides = [1, 1]} : vector<7x768xbf16> to vector<7x640xbf16>
    %cst = arith.constant dense<0.000000e+00> : vector<7x256xf32>
    %29 = tpu.matmul %28, %0, %cst {dimension_numbers = #tpu.dot_dimension_numbers<[1], [0], [0], [1], [0, 0, 1, 1], [], []>} : vector<7x640xbf16>, vector<640x256xbf16>, vector<7x256xf32> -> vector<7x256xf32>
    %30 = vector.extract_strided_slice %27 {offsets = [0, 128], sizes = [7, 640], strides = [1, 1]} : vector<7x768xbf16> to vector<7x640xbf16>
    %cst_21 = arith.constant dense<0.000000e+00> : vector<7x256xf32>
    %31 = tpu.matmul %30, %0, %cst_21 {dimension_numbers = #tpu.dot_dimension_numbers<[1], [0], [0], [1], [0, 0, 1, 1], [], []>} : vector<7x640xbf16>, vector<640x256xbf16>, vector<7x256xf32> -> vector<7x256xf32>
    %32 = arith.maximumf %29, %31 : vector<7x256xf32>
    %33 = vector.extract_strided_slice %32 {offsets = [0, 0], sizes = [7, 128], strides = [1, 1]} : vector<7x256xf32> to vector<7x128xf32>
    %34 = vector.extract_strided_slice %32 {offsets = [0, 128], sizes = [7, 128], strides = [1, 1]} : vector<7x256xf32> to vector<7x128xf32>
    %35 = arith.maximumf %33, %34 : vector<7x128xf32>
    %36 = vector.broadcast %4 : vector<1x128xf32> to vector<7x128xf32>
    %37 = arith.addf %35, %36 : vector<7x128xf32>
    %cst_22 = arith.constant 0.000000e+00 : f32
    %38 = vector.broadcast %cst_22 : f32 to vector<7x128xf32>
    %39 = arith.maximumf %37, %38 : vector<7x128xf32>
    %40 = vector.extract_strided_slice %17 {offsets = [0, 0], sizes = [7, 128], strides = [1, 1]} : vector<8x128xf32> to vector<7x128xf32>
    %41 = vector.extract_strided_slice %19 {offsets = [0, 0], sizes = [7, 128], strides = [1, 1]} : vector<8x128xf32> to vector<7x128xf32>
    %42 = vector.extract_strided_slice %13 {offsets = [1, 0], sizes = [7, 128], strides = [1, 1]} : vector<8x128xf32> to vector<7x128xf32>
    %43 = vector.extract_strided_slice %15 {offsets = [1, 0], sizes = [7, 128], strides = [1, 1]} : vector<8x128xf32> to vector<7x128xf32>
    %44 = vector.extract_strided_slice %17 {offsets = [1, 0], sizes = [7, 128], strides = [1, 1]} : vector<8x128xf32> to vector<7x128xf32>
    %45 = vector.extract_strided_slice %19 {offsets = [1, 0], sizes = [7, 128], strides = [1, 1]} : vector<8x128xf32> to vector<7x128xf32>
    %46 = tpu.concatenate %40, %41, %42, %43, %44, %45 in 1 : vector<7x128xf32>, vector<7x128xf32>, vector<7x128xf32>, vector<7x128xf32>, vector<7x128xf32>, vector<7x128xf32> -> vector<7x768xf32>
    %47 = arith.truncf %46 : vector<7x768xf32> to vector<7x768xbf16>
    %48 = vector.extract_strided_slice %47 {offsets = [0, 0], sizes = [7, 640], strides = [1, 1]} : vector<7x768xbf16> to vector<7x640xbf16>
    %cst_23 = arith.constant dense<0.000000e+00> : vector<7x256xf32>
    %49 = tpu.matmul %48, %0, %cst_23 {dimension_numbers = #tpu.dot_dimension_numbers<[1], [0], [0], [1], [0, 0, 1, 1], [], []>} : vector<7x640xbf16>, vector<640x256xbf16>, vector<7x256xf32> -> vector<7x256xf32>
    %50 = vector.extract_strided_slice %47 {offsets = [0, 128], sizes = [7, 640], strides = [1, 1]} : vector<7x768xbf16> to vector<7x640xbf16>
    %cst_24 = arith.constant dense<0.000000e+00> : vector<7x256xf32>
    %51 = tpu.matmul %50, %0, %cst_24 {dimension_numbers = #tpu.dot_dimension_numbers<[1], [0], [0], [1], [0, 0, 1, 1], [], []>} : vector<7x640xbf16>, vector<640x256xbf16>, vector<7x256xf32> -> vector<7x256xf32>
    %52 = arith.maximumf %49, %51 : vector<7x256xf32>
    %53 = vector.extract_strided_slice %52 {offsets = [0, 0], sizes = [7, 128], strides = [1, 1]} : vector<7x256xf32> to vector<7x128xf32>
    %54 = vector.extract_strided_slice %52 {offsets = [0, 128], sizes = [7, 128], strides = [1, 1]} : vector<7x256xf32> to vector<7x128xf32>
    %55 = arith.maximumf %53, %54 : vector<7x128xf32>
    %56 = vector.broadcast %4 : vector<1x128xf32> to vector<7x128xf32>
    %57 = arith.addf %55, %56 : vector<7x128xf32>
    %cst_25 = arith.constant 0.000000e+00 : f32
    %58 = vector.broadcast %cst_25 : f32 to vector<7x128xf32>
    %59 = arith.maximumf %57, %58 : vector<7x128xf32>
    %60 = vector.extract_strided_slice %39 {offsets = [0, 0], sizes = [5, 128], strides = [1, 1]} : vector<7x128xf32> to vector<5x128xf32>
    %61 = vector.extract_strided_slice %59 {offsets = [0, 0], sizes = [5, 128], strides = [1, 1]} : vector<7x128xf32> to vector<5x128xf32>
    %62 = vector.extract_strided_slice %39 {offsets = [1, 0], sizes = [5, 128], strides = [1, 1]} : vector<7x128xf32> to vector<5x128xf32>
    %63 = vector.extract_strided_slice %59 {offsets = [1, 0], sizes = [5, 128], strides = [1, 1]} : vector<7x128xf32> to vector<5x128xf32>
    %64 = vector.extract_strided_slice %39 {offsets = [2, 0], sizes = [5, 128], strides = [1, 1]} : vector<7x128xf32> to vector<5x128xf32>
    %65 = vector.extract_strided_slice %59 {offsets = [2, 0], sizes = [5, 128], strides = [1, 1]} : vector<7x128xf32> to vector<5x128xf32>
    %66 = tpu.concatenate %60, %61, %62, %63, %64, %65 in 1 : vector<5x128xf32>, vector<5x128xf32>, vector<5x128xf32>, vector<5x128xf32>, vector<5x128xf32>, vector<5x128xf32> -> vector<5x768xf32>
    %67 = arith.truncf %66 : vector<5x768xf32> to vector<5x768xbf16>
    %68 = vector.extract_strided_slice %67 {offsets = [0, 0], sizes = [5, 640], strides = [1, 1]} : vector<5x768xbf16> to vector<5x640xbf16>
    %cst_26 = arith.constant dense<0.000000e+00> : vector<5x256xf32>
    %69 = tpu.matmul %68, %1, %cst_26 {dimension_numbers = #tpu.dot_dimension_numbers<[1], [0], [0], [1], [0, 0, 1, 1], [], []>} : vector<5x640xbf16>, vector<640x256xbf16>, vector<5x256xf32> -> vector<5x256xf32>
    %70 = vector.extract_strided_slice %67 {offsets = [0, 128], sizes = [5, 640], strides = [1, 1]} : vector<5x768xbf16> to vector<5x640xbf16>
    %cst_27 = arith.constant dense<0.000000e+00> : vector<5x256xf32>
    %71 = tpu.matmul %70, %1, %cst_27 {dimension_numbers = #tpu.dot_dimension_numbers<[1], [0], [0], [1], [0, 0, 1, 1], [], []>} : vector<5x640xbf16>, vector<640x256xbf16>, vector<5x256xf32> -> vector<5x256xf32>
    %72 = arith.maximumf %69, %71 : vector<5x256xf32>
    %73 = vector.extract_strided_slice %72 {offsets = [0, 0], sizes = [5, 128], strides = [1, 1]} : vector<5x256xf32> to vector<5x128xf32>
    %74 = vector.extract_strided_slice %72 {offsets = [0, 128], sizes = [5, 128], strides = [1, 1]} : vector<5x256xf32> to vector<5x128xf32>
    %75 = arith.maximumf %73, %74 : vector<5x128xf32>
    %76 = vector.broadcast %5 : vector<1x128xf32> to vector<5x128xf32>
    %77 = arith.addf %75, %76 : vector<5x128xf32>
    %cst_28 = arith.constant 0.000000e+00 : f32
    %78 = vector.broadcast %cst_28 : f32 to vector<5x128xf32>
    %79 = arith.maximumf %77, %78 : vector<5x128xf32>
    %80 = vector.extract_strided_slice %79 {offsets = [0, 0], sizes = [1, 128], strides = [1, 1]} : vector<5x128xf32> to vector<1x128xf32>
    %81 = arith.truncf %80 : vector<1x128xf32> to vector<1x128xbf16>
    %c0_29 = arith.constant 0 : index
    %c0_30 = arith.constant 0 : index
    %c0_31 = arith.constant 0 : index
    %82 = vector.load %arg6[%c0_29, %c0_30, %c0_31] : memref<5x128x128xbf16, #tpu.memory_space<vmem>>, vector<1x128x128xbf16>
    %83 = vector.shape_cast %82 : vector<1x128x128xbf16> to vector<128x128xbf16>
    %cst_32 = arith.constant dense<0.000000e+00> : vector<1x128xf32>
    %84 = tpu.matmul %81, %83, %cst_32 {dimension_numbers = #tpu.dot_dimension_numbers<[1], [0], [0], [1], [0, 0, 1, 1], [], []>} : vector<1x128xbf16>, vector<128x128xbf16>, vector<1x128xf32> -> vector<1x128xf32>
    %85 = arith.addf %6, %84 : vector<1x128xf32>
    %86 = vector.extract_strided_slice %79 {offsets = [1, 0], sizes = [1, 128], strides = [1, 1]} : vector<5x128xf32> to vector<1x128xf32>
    %87 = arith.truncf %86 : vector<1x128xf32> to vector<1x128xbf16>
    %c1 = arith.constant 1 : index
    %c0_33 = arith.constant 0 : index
    %c0_34 = arith.constant 0 : index
    %88 = vector.load %arg6[%c1, %c0_33, %c0_34] : memref<5x128x128xbf16, #tpu.memory_space<vmem>>, vector<1x128x128xbf16>
    %89 = vector.shape_cast %88 : vector<1x128x128xbf16> to vector<128x128xbf16>
    %cst_35 = arith.constant dense<0.000000e+00> : vector<1x128xf32>
    %90 = tpu.matmul %87, %89, %cst_35 {dimension_numbers = #tpu.dot_dimension_numbers<[1], [0], [0], [1], [0, 0, 1, 1], [], []>} : vector<1x128xbf16>, vector<128x128xbf16>, vector<1x128xf32> -> vector<1x128xf32>
    %91 = arith.addf %85, %90 : vector<1x128xf32>
    %92 = vector.extract_strided_slice %79 {offsets = [2, 0], sizes = [1, 128], strides = [1, 1]} : vector<5x128xf32> to vector<1x128xf32>
    %93 = arith.truncf %92 : vector<1x128xf32> to vector<1x128xbf16>
    %c2 = arith.constant 2 : index
    %c0_36 = arith.constant 0 : index
    %c0_37 = arith.constant 0 : index
    %94 = vector.load %arg6[%c2, %c0_36, %c0_37] : memref<5x128x128xbf16, #tpu.memory_space<vmem>>, vector<1x128x128xbf16>
    %95 = vector.shape_cast %94 : vector<1x128x128xbf16> to vector<128x128xbf16>
    %cst_38 = arith.constant dense<0.000000e+00> : vector<1x128xf32>
    %96 = tpu.matmul %93, %95, %cst_38 {dimension_numbers = #tpu.dot_dimension_numbers<[1], [0], [0], [1], [0, 0, 1, 1], [], []>} : vector<1x128xbf16>, vector<128x128xbf16>, vector<1x128xf32> -> vector<1x128xf32>
    %97 = arith.addf %91, %96 : vector<1x128xf32>
    %98 = vector.extract_strided_slice %79 {offsets = [3, 0], sizes = [1, 128], strides = [1, 1]} : vector<5x128xf32> to vector<1x128xf32>
    %99 = arith.truncf %98 : vector<1x128xf32> to vector<1x128xbf16>
    %c3 = arith.constant 3 : index
    %c0_39 = arith.constant 0 : index
    %c0_40 = arith.constant 0 : index
    %100 = vector.load %arg6[%c3, %c0_39, %c0_40] : memref<5x128x128xbf16, #tpu.memory_space<vmem>>, vector<1x128x128xbf16>
    %101 = vector.shape_cast %100 : vector<1x128x128xbf16> to vector<128x128xbf16>
    %cst_41 = arith.constant dense<0.000000e+00> : vector<1x128xf32>
    %102 = tpu.matmul %99, %101, %cst_41 {dimension_numbers = #tpu.dot_dimension_numbers<[1], [0], [0], [1], [0, 0, 1, 1], [], []>} : vector<1x128xbf16>, vector<128x128xbf16>, vector<1x128xf32> -> vector<1x128xf32>
    %103 = arith.addf %97, %102 : vector<1x128xf32>
    %104 = vector.extract_strided_slice %79 {offsets = [4, 0], sizes = [1, 128], strides = [1, 1]} : vector<5x128xf32> to vector<1x128xf32>
    %105 = arith.truncf %104 : vector<1x128xf32> to vector<1x128xbf16>
    %c4 = arith.constant 4 : index
    %c0_42 = arith.constant 0 : index
    %c0_43 = arith.constant 0 : index
    %106 = vector.load %arg6[%c4, %c0_42, %c0_43] : memref<5x128x128xbf16, #tpu.memory_space<vmem>>, vector<1x128x128xbf16>
    %107 = vector.shape_cast %106 : vector<1x128x128xbf16> to vector<128x128xbf16>
    %cst_44 = arith.constant dense<0.000000e+00> : vector<1x128xf32>
    %108 = tpu.matmul %105, %107, %cst_44 {dimension_numbers = #tpu.dot_dimension_numbers<[1], [0], [0], [1], [0, 0, 1, 1], [], []>} : vector<1x128xbf16>, vector<128x128xbf16>, vector<1x128xf32> -> vector<1x128xf32>
    %109 = arith.addf %103, %108 : vector<1x128xf32>
    %cst_45 = arith.constant 0.000000e+00 : f32
    %110 = vector.broadcast %cst_45 : f32 to vector<1x128xf32>
    %111 = arith.maximumf %109, %110 : vector<1x128xf32>
    %112 = arith.truncf %111 : vector<1x128xf32> to vector<1x128xbf16>
    %cst_46 = arith.constant dense<0.000000e+00> : vector<1x128xf32>
    %113 = tpu.matmul %112, %2, %cst_46 {dimension_numbers = #tpu.dot_dimension_numbers<[1], [0], [0], [1], [0, 0, 1, 1], [], []>} : vector<1x128xbf16>, vector<128x128xbf16>, vector<1x128xf32> -> vector<1x128xf32>
    %114 = arith.addf %113, %7 : vector<1x128xf32>
    %cst_47 = arith.constant 0.000000e+00 : f32
    %115 = vector.broadcast %cst_47 : f32 to vector<1x128xf32>
    %116 = arith.maximumf %114, %115 : vector<1x128xf32>
    %117 = arith.truncf %116 : vector<1x128xf32> to vector<1x128xbf16>
    %cst_48 = arith.constant dense<0.000000e+00> : vector<1x128xf32>
    %118 = tpu.matmul %117, %3, %cst_48 {dimension_numbers = #tpu.dot_dimension_numbers<[1], [0], [0], [1], [0, 0, 1, 1], [], []>} : vector<1x128xbf16>, vector<128x128xbf16>, vector<1x128xf32> -> vector<1x128xf32>
    %119 = arith.addf %118, %8 : vector<1x128xf32>
    %c0_49 = arith.constant 0 : index
    %c0_50 = arith.constant 0 : index
    %c0_51 = arith.constant 0 : index
    %120 = vector.load %arg12[%c0_49, %c0_50, %c0_51] : memref<1x1x128xf32, #tpu.memory_space<vmem>>, vector<1x1x128xf32>
    %121 = vector.shape_cast %120 : vector<1x1x128xf32> to vector<1x128xf32>
    %122 = vector.shape_cast %119 : vector<1x128xf32> to vector<1x1x128xf32>
    tpu.vector_store %arg12[%c0_49, %c0_50, %c0_51], %122 {strides = array<i32>} : memref<1x1x128xf32, #tpu.memory_space<vmem>>, vector<1x1x128xf32>,
    return
  }
  func.func @transform_0(%arg0: i32) -> (i32, i32, i32, i32) {
    %c0_i32 = arith.constant 0 : i32
    %c0_i32_0 = arith.constant 0 : i32
    %c0_i32_1 = arith.constant 0 : i32
    %c0_i32_2 = arith.constant 0 : i32
    return %arg0, %c0_i32, %c0_i32_0, %c0_i32_1 : i32, i32, i32, i32
  }
  func.func @transform_1(%arg0: i32) -> (i32, i32) {
    %c0_i32 = arith.constant 0 : i32
    %c0_i32_0 = arith.constant 0 : i32
    %c0_i32_1 = arith.constant 0 : i32
    return %c0_i32, %c0_i32_0 : i32, i32
  }
  func.func @transform_2(%arg0: i32) -> (i32, i32) {
    %c0_i32 = arith.constant 0 : i32
    %c0_i32_0 = arith.constant 0 : i32
    %c0_i32_1 = arith.constant 0 : i32
    return %c0_i32, %c0_i32_0 : i32, i32
  }
  func.func @transform_3(%arg0: i32) -> (i32, i32) {
    %c0_i32 = arith.constant 0 : i32
    %c0_i32_0 = arith.constant 0 : i32
    %c0_i32_1 = arith.constant 0 : i32
    return %c0_i32, %c0_i32_0 : i32, i32
  }
  func.func @transform_4(%arg0: i32) -> (i32, i32) {
    %c0_i32 = arith.constant 0 : i32
    %c0_i32_0 = arith.constant 0 : i32
    %c0_i32_1 = arith.constant 0 : i32
    return %c0_i32, %c0_i32_0 : i32, i32
  }
  func.func @transform_5(%arg0: i32) -> (i32, i32, i32) {
    %c0_i32 = arith.constant 0 : i32
    %c0_i32_0 = arith.constant 0 : i32
    %c0_i32_1 = arith.constant 0 : i32
    %c0_i32_2 = arith.constant 0 : i32
    return %c0_i32, %c0_i32_0, %c0_i32_1 : i32, i32, i32
  }
  func.func @transform_6(%arg0: i32) -> (i32, i32) {
    %c0_i32 = arith.constant 0 : i32
    %c0_i32_0 = arith.constant 0 : i32
    %c0_i32_1 = arith.constant 0 : i32
    return %c0_i32, %c0_i32_0 : i32, i32
  }
  func.func @transform_7(%arg0: i32) -> (i32, i32) {
    %c0_i32 = arith.constant 0 : i32
    %c0_i32_0 = arith.constant 0 : i32
    %c0_i32_1 = arith.constant 0 : i32
    return %c0_i32, %c0_i32_0 : i32, i32
  }
  func.func @transform_8(%arg0: i32) -> (i32, i32) {
    %c0_i32 = arith.constant 0 : i32
    %c0_i32_0 = arith.constant 0 : i32
    %c0_i32_1 = arith.constant 0 : i32
    return %c0_i32, %c0_i32_0 : i32, i32
  }
  func.func @transform_9(%arg0: i32) -> (i32, i32) {
    %c0_i32 = arith.constant 0 : i32
    %c0_i32_0 = arith.constant 0 : i32
    %c0_i32_1 = arith.constant 0 : i32
    return %c0_i32, %c0_i32_0 : i32, i32
  }
  func.func @transform_10(%arg0: i32) -> (i32, i32) {
    %c0_i32 = arith.constant 0 : i32
    %c0_i32_0 = arith.constant 0 : i32
    %c0_i32_1 = arith.constant 0 : i32
    return %c0_i32, %c0_i32_0 : i32, i32
  }
  func.func @transform_11(%arg0: i32) -> (i32, i32, i32) {
    %c0_i32 = arith.constant 0 : i32
    %c0_i32_0 = arith.constant 0 : i32
    %c0_i32_1 = arith.constant 0 : i32
    return %arg0, %c0_i32, %c0_i32_0 : i32, i32, i32
  }
}

</mosaic_0001>

<llo_original>
// kernel: net_forward.1
$region0: #{net_forward.1}
  #allocation0 [shape = 'u32[]', space=smem, size = 0x4, offset = 0x4, fixed_abs, tag = 'smem constant byte address 0x4 - core index']
  #allocation1 [shape = 'u32[144,128]{1,0:T(1,128)}', space=vmem, size = 0x12000, scoped, tag = 'internal scratch']
  %s0 = inlined_call_operand.vmem [shape: bf16[2,4,8,128], index: 0, kind: input, shape index: {}]
  %s1 = inlined_call_operand.vmem [shape: bf16[640,256], index: 1, kind: input, shape index: {}]
  %s2 = inlined_call_operand.vmem [shape: f32[1,128], index: 2, kind: input, shape index: {}]
  %s3 = inlined_call_operand.hbm [shape: bf16[640,256], index: 3, kind: input, shape index: {}]
  %s4 = inlined_call_operand.vmem [shape: f32[1,128], index: 4, kind: input, shape index: {}]
  %s5 = inlined_call_operand.hbm [shape: bf16[5,128,128], index: 5, kind: input, shape index: {}]
  %s6 = inlined_call_operand.vmem [shape: f32[1,128], index: 6, kind: input, shape index: {}]
  %s7 = inlined_call_operand.vmem [shape: bf16[128,128], index: 7, kind: input, shape index: {}]
  %s8 = inlined_call_operand.vmem [shape: f32[1,128], index: 8, kind: input, shape index: {}]
  %s9 = inlined_call_operand.hbm [shape: bf16[128,128], index: 9, kind: input, shape index: {}]
  %s10 = inlined_call_operand.vmem [shape: f32[1,128], index: 10, kind: input, shape index: {}]
  %s11 = inlined_call_operand.hbm [shape: f32[2,1,128], index: 11, kind: output, shape index: {}]
  %s12 = sld [smem:[#allocation0]]
  $region89: #{net_forward.1} parent=0
    _
  %s14 = ssub.s32 1, %s12
  %s15 = scalar_select 0, %s14, %s12
  $region1: #{net_forward.1} parent=0
    #allocation2 [shape = 'u8[327680]{0}', space=vmem, size = 0x50000, scoped, tag = 'input window, operand 3, single buffered']
    #allocation3 [shape = 's32[2]{0}', space=sflag, size = 0x8, scoped, tag = 'scoped memory for net_forward.1']
    #allocation4 [shape = 's32[2]{0}', space=sflag, size = 0x8, scoped, tag = 'scoped memory for net_forward.1']
    #allocation5 [shape = 'u8[163840]{0}', space=vmem, size = 0x28000, scoped, tag = 'input window, operand 5, single buffered']
    #allocation6 [shape = 's32[1]{0}', space=sflag, size = 0x4, scoped, tag = 'scoped memory for net_forward.1']
    #allocation7 [shape = 'u8[32768]{0}', space=vmem, size = 0x8000, scoped, tag = 'input window, operand 9, single buffered']
    #allocation8 [shape = 'u8[1024]{0}', space=vmem, size = 0x400, scoped, tag = 'output window, operand 0']
    %16 = vsyncpa [#allocation3], 0
    %17 = vsyncpa [#allocation6], 0
    %18 = vsyncpa [#allocation4], 0
    %s19 = scalar_lea.sflag [#allocation4], 1
    %20 = vsyncpa %s19, 0
    loop: start=0, step=1, limit=4
    $region2: #{net_forward.1} parent=1 // loop_pre_header
      _
    $region3: #{net_forward.1} parent=1 // loop_header
      %s22 = sphi 0, %s26
      %p23 = scmp.ge.s32.totalorder %s22, 4
      %s32 = sphi 0, %s34
      %s35 = sphi 0, %s32
      %s36 = sphi 0, %s35
      %s52 = sphi 0, %s36
      %s56 = sphi 0, %s56
      %s58 = sphi 0, %s56
      %s59 = sphi 0, %s58
      %s73 = sphi 0, %s59
      %s77 = sphi 0, %s77
      %s79 = sphi 0, %s77
      %s80 = sphi 0, %s79
      %s94 = sphi 0, %s80
      %s98 = sphi 0, %s98
      %s100 = sphi 0, %s98
      %s101 = sphi 0, %s100
      %s115 = sphi 0, %s101
      %s119 = sphi 0, %s119
      %s121 = sphi 0, %s119
      %s122 = sphi 0, %s121
      %s136 = sphi 0, %s122
      %s140 = sphi 0, %s140
      %s142 = sphi 0, %s140
      %s143 = sphi 0, %s142
      %s157 = sphi 0, %s143
      %s161 = sphi 0, %s161
      %s163 = sphi 0, %s161
      %s164 = sphi 0, %s163
      %s178 = sphi 0, %s164
      %s182 = sphi 0, %s182
      %s184 = sphi 0, %s182
      %s185 = sphi 0, %s184
      %s199 = sphi 0, %s185
      %s203 = sphi 0, %s203
      %s205 = sphi 0, %s203
      %s206 = sphi 0, %s205
      %s220 = sphi 0, %s206
      %s224 = sphi 0, %s224
      %s226 = sphi 0, %s224
      %s227 = sphi 0, %s226
      %s241 = sphi 0, %s227
      %s245 = sphi 0, %s245
      %s247 = sphi 0, %s245
      %s248 = sphi 0, %s247
      %s262 = sphi 0, %s248
      %s268 = sphi 0, %s270
      %s271 = sphi 0, %s268
      %s272 = sphi 0, %s271
      %s288 = sphi 0, %s272
    $region4: #{net_forward.1} parent=1 // loop_header_branch
      %25 = sbr.rel (%p23) target = $region8
    $region5: #{net_forward.1} parent=1 // loop_body
      %s27 = ssub.s32 %s22, 1
      %s28 = ssub.s32 %s22, 2
      %s29 = sadd.s32 %s22, 1
      %s30 = ssub.s32 %s22, %s29
      %p31 = scmp.eq.s32.totalorder %s30, 0
      %s33 = sadd.s32 %s32, 1
      %s34 = scalar_select %p31, %s32, %s33
      %p37 = pneg %p31
      %p38 = scmp.eq.s32.totalorder %s22, 1
      %p39 = por %p37, %p38
      %p40 = scmp.ne.s32.totalorder %s32, %s35
      %p41 = scmp.eq.s32.totalorder %s22, 0
      %p42 = por %p40, %p41
      %p43 = scmp.ne.s32.totalorder %s32, %s35
      %p44 = scmp.eq.s32.totalorder %s27, 1
      %p45 = por %p43, %p44
      %p46 = scmp.ne.s32.totalorder %s35, %s36
      %p47 = scmp.eq.s32.totalorder %s27, 0
      %p48 = por %p46, %p47
      %p49 = scmp.ne.s32.totalorder %s35, %s36
      %p50 = scmp.eq.s32.totalorder %s28, 1
      %p51 = por %p49, %p50
      %p53 = scmp.ne.s32.totalorder %s36, %s52
      %p54 = scmp.eq.s32.totalorder %s28, 0
      %p55 = por %p53, %p54
      %s57 = sadd.s32 %s56, 1
      %p60 = scmp.eq.s32.totalorder %s22, 1
      %p61 = scmp.ne.s32.totalorder %s56, %s58
      %p62 = scmp.eq.s32.totalorder %s22, 0
      %p63 = por %p61, %p62
      %p64 = scmp.ne.s32.totalorder %s56, %s58
      %p65 = scmp.eq.s32.totalorder %s27, 1
      %p66 = por %p64, %p65
      %p67 = scmp.ne.s32.totalorder %s58, %s59
      %p68 = scmp.eq.s32.totalorder %s27, 0
      %p69 = por %p67, %p68
      %p70 = scmp.ne.s32.totalorder %s58, %s59
      %p71 = scmp.eq.s32.totalorder %s28, 1
      %p72 = por %p70, %p71
      %p74 = scmp.ne.s32.totalorder %s59, %s73
      %p75 = scmp.eq.s32.totalorder %s28, 0
      %p76 = por %p74, %p75
      %s78 = sadd.s32 %s77, 1
      %p81 = scmp.eq.s32.totalorder %s22, 1
      %p82 = scmp.ne.s32.totalorder %s77, %s79
      %p83 = scmp.eq.s32.totalorder %s22, 0
      %p84 = por %p82, %p83
      %p85 = scmp.ne.s32.totalorder %s77, %s79
      %p86 = scmp.eq.s32.totalorder %s27, 1
      %p87 = por %p85, %p86
      %p88 = scmp.ne.s32.totalorder %s79, %s80
      %p89 = scmp.eq.s32.totalorder %s27, 0
      %p90 = por %p88, %p89
      %p91 = scmp.ne.s32.totalorder %s79, %s80
      %p92 = scmp.eq.s32.totalorder %s28, 1
      %p93 = por %p91, %p92
      %p95 = scmp.ne.s32.totalorder %s80, %s94
      %p96 = scmp.eq.s32.totalorder %s28, 0
      %p97 = por %p95, %p96
      %s99 = sadd.s32 %s98, 1
      %p102 = scmp.eq.s32.totalorder %s22, 1
      %p103 = scmp.ne.s32.totalorder %s98, %s100
      %p104 = scmp.eq.s32.totalorder %s22, 0
      %p105 = por %p103, %p104
      %p106 = scmp.ne.s32.totalorder %s98, %s100
      %p107 = scmp.eq.s32.totalorder %s27, 1
      %p108 = por %p106, %p107
      %p109 = scmp.ne.s32.totalorder %s100, %s101
      %p110 = scmp.eq.s32.totalorder %s27, 0
      %p111 = por %p109, %p110
      %p112 = scmp.ne.s32.totalorder %s100, %s101
      %p113 = scmp.eq.s32.totalorder %s28, 1
      %p114 = por %p112, %p113
      %p116 = scmp.ne.s32.totalorder %s101, %s115
      %p117 = scmp.eq.s32.totalorder %s28, 0
      %p118 = por %p116, %p117
      %s120 = sadd.s32 %s119, 1
      %p123 = scmp.eq.s32.totalorder %s22, 1
      %p124 = scmp.ne.s32.totalorder %s119, %s121
      %p125 = scmp.eq.s32.totalorder %s22, 0
      %p126 = por %p124, %p125
      %p127 = scmp.ne.s32.totalorder %s119, %s121
      %p128 = scmp.eq.s32.totalorder %s27, 1
      %p129 = por %p127, %p128
      %p130 = scmp.ne.s32.totalorder %s121, %s122
      %p131 = scmp.eq.s32.totalorder %s27, 0
      %p132 = por %p130, %p131
      %p133 = scmp.ne.s32.totalorder %s121, %s122
      %p134 = scmp.eq.s32.totalorder %s28, 1
      %p135 = por %p133, %p134
      %p137 = scmp.ne.s32.totalorder %s122, %s136
      %p138 = scmp.eq.s32.totalorder %s28, 0
      %p139 = por %p137, %p138
      %s141 = sadd.s32 %s140, 1
      %p144 = scmp.eq.s32.totalorder %s22, 1
      %p145 = scmp.ne.s32.totalorder %s140, %s142
      %p146 = scmp.eq.s32.totalorder %s22, 0
      %p147 = por %p145, %p146
      %p148 = scmp.ne.s32.totalorder %s140, %s142
      %p149 = scmp.eq.s32.totalorder %s27, 1
      %p150 = por %p148, %p149
      %p151 = scmp.ne.s32.totalorder %s142, %s143
      %p152 = scmp.eq.s32.totalorder %s27, 0
      %p153 = por %p151, %p152
      %p154 = scmp.ne.s32.totalorder %s142, %s143
      %p155 = scmp.eq.s32.totalorder %s28, 1
      %p156 = por %p154, %p155
      %p158 = scmp.ne.s32.totalorder %s143, %s157
      %p159 = scmp.eq.s32.totalorder %s28, 0
      %p160 = por %p158, %p159
      %s162 = sadd.s32 %s161, 1
      %p165 = scmp.eq.s32.totalorder %s22, 1
      %p166 = scmp.ne.s32.totalorder %s161, %s163
      %p167 = scmp.eq.s32.totalorder %s22, 0
      %p168 = por %p166, %p167
      %p169 = scmp.ne.s32.totalorder %s161, %s163
      %p170 = scmp.eq.s32.totalorder %s27, 1
      %p171 = por %p169, %p170
      %p172 = scmp.ne.s32.totalorder %s163, %s164
      %p173 = scmp.eq.s32.totalorder %s27, 0
      %p174 = por %p172, %p173
      %p175 = scmp.ne.s32.totalorder %s163, %s164
      %p176 = scmp.eq.s32.totalorder %s28, 1
      %p177 = por %p175, %p176
      %p179 = scmp.ne.s32.totalorder %s164, %s178
      %p180 = scmp.eq.s32.totalorder %s28, 0
      %p181 = por %p179, %p180
      %s183 = sadd.s32 %s182, 1
      %p186 = scmp.eq.s32.totalorder %s22, 1
      %p187 = scmp.ne.s32.totalorder %s182, %s184
      %p188 = scmp.eq.s32.totalorder %s22, 0
      %p189 = por %p187, %p188
      %p190 = scmp.ne.s32.totalorder %s182, %s184
      %p191 = scmp.eq.s32.totalorder %s27, 1
      %p192 = por %p190, %p191
      %p193 = scmp.ne.s32.totalorder %s184, %s185
      %p194 = scmp.eq.s32.totalorder %s27, 0
      %p195 = por %p193, %p194
      %p196 = scmp.ne.s32.totalorder %s184, %s185
      %p197 = scmp.eq.s32.totalorder %s28, 1
      %p198 = por %p196, %p197
      %p200 = scmp.ne.s32.totalorder %s185, %s199
      %p201 = scmp.eq.s32.totalorder %s28, 0
      %p202 = por %p200, %p201
      %s204 = sadd.s32 %s203, 1
      %p207 = scmp.eq.s32.totalorder %s22, 1
      %p208 = scmp.ne.s32.totalorder %s203, %s205
      %p209 = scmp.eq.s32.totalorder %s22, 0
      %p210 = por %p208, %p209
      %p211 = scmp.ne.s32.totalorder %s203, %s205
      %p212 = scmp.eq.s32.totalorder %s27, 1
      %p213 = por %p211, %p212
      %p214 = scmp.ne.s32.totalorder %s205, %s206
      %p215 = scmp.eq.s32.totalorder %s27, 0
      %p216 = por %p214, %p215
      %p217 = scmp.ne.s32.totalorder %s205, %s206
      %p218 = scmp.eq.s32.totalorder %s28, 1
      %p219 = por %p217, %p218
      %p221 = scmp.ne.s32.totalorder %s206, %s220
      %p222 = scmp.eq.s32.totalorder %s28, 0
      %p223 = por %p221, %p222
      %s225 = sadd.s32 %s224, 1
      %p228 = scmp.eq.s32.totalorder %s22, 1
      %p229 = scmp.ne.s32.totalorder %s224, %s226
      %p230 = scmp.eq.s32.totalorder %s22, 0
      %p231 = por %p229, %p230
      %p232 = scmp.ne.s32.totalorder %s224, %s226
      %p233 = scmp.eq.s32.totalorder %s27, 1
      %p234 = por %p232, %p233
      %p235 = scmp.ne.s32.totalorder %s226, %s227
      %p236 = scmp.eq.s32.totalorder %s27, 0
      %p237 = por %p235, %p236
      %p238 = scmp.ne.s32.totalorder %s226, %s227
      %p239 = scmp.eq.s32.totalorder %s28, 1
      %p240 = por %p238, %p239
      %p242 = scmp.ne.s32.totalorder %s227, %s241
      %p243 = scmp.eq.s32.totalorder %s28, 0
      %p244 = por %p242, %p243
      %s246 = sadd.s32 %s245, 1
      %p249 = scmp.eq.s32.totalorder %s22, 1
      %p250 = scmp.ne.s32.totalorder %s245, %s247
      %p251 = scmp.eq.s32.totalorder %s22, 0
      %p252 = por %p250, %p251
      %p253 = scmp.ne.s32.totalorder %s245, %s247
      %p254 = scmp.eq.s32.totalorder %s27, 1
      %p255 = por %p253, %p254
      %p256 = scmp.ne.s32.totalorder %s247, %s248
      %p257 = scmp.eq.s32.totalorder %s27, 0
      %p258 = por %p256, %p257
      %p259 = scmp.ne.s32.totalorder %s247, %s248
      %p260 = scmp.eq.s32.totalorder %s28, 1
      %p261 = por %p259, %p260
      %p263 = scmp.ne.s32.totalorder %s248, %s262
      %p264 = scmp.eq.s32.totalorder %s28, 0
      %p265 = por %p263, %p264
      %s266 = ssub.s32 %s22, %s29
      %p267 = scmp.eq.s32.totalorder %s266, 0
      %s269 = sadd.s32 %s268, 1
      %s270 = scalar_select %p267, %s268, %s269
      %p273 = pneg %p267
      %p274 = scmp.eq.s32.totalorder %s22, 1
      %p275 = por %p273, %p274
      %p276 = scmp.ne.s32.totalorder %s268, %s271
      %p277 = scmp.eq.s32.totalorder %s22, 0
      %p278 = por %p276, %p277
      %p279 = scmp.ne.s32.totalorder %s268, %s271
      %p280 = scmp.eq.s32.totalorder %s27, 1
      %p281 = por %p279, %p280
      %p282 = scmp.ne.s32.totalorder %s271, %s272
      %p283 = scmp.eq.s32.totalorder %s27, 0
      %p284 = por %p282, %p283
      %p285 = scmp.ne.s32.totalorder %s271, %s272
      %p286 = scmp.eq.s32.totalorder %s28, 1
      %p287 = por %p285, %p286
      %p289 = scmp.ne.s32.totalorder %s272, %s288
      %p290 = scmp.eq.s32.totalorder %s28, 0
      %p291 = por %p289, %p290
      %p292 = scmp.le.s32.totalorder 1, %s22
      %p293 = scmp.lt.s32.totalorder %s22, 3
      %p294 = pnand %p292, %p293
      %p295 = pneg %p294
      // Predicated region
      $region9: #{net_forward.1} parent=5 // pred_check
        _
      $region10: #{net_forward.1} parent=5 // pred_check_branch
        %297 = sbr.rel (%p294) target = $region12
      $region11: #{net_forward.1} parent=5 // pred_region
        %s298 = ssub.s32 %s22, 1
        // Predicated region
        $region13: #{net_forward.1} parent=11 // pred_check
          %p299 = pneg %p69
        $region14: #{net_forward.1} parent=11 // pred_check_branch
          %301 = sbr.rel (%p299) target = $region16
        $region15: #{net_forward.1} parent=11 // pred_region
          _
        $region16: #{net_forward.1} parent=11 // pred_fallthru
          _
        // Predicated region
        $region17: #{net_forward.1} parent=11 // pred_check
          %p302 = pneg %p90
        $region18: #{net_forward.1} parent=11 // pred_check_branch
          %304 = sbr.rel (%p302) target = $region20
        $region19: #{net_forward.1} parent=11 // pred_region
          _
        $region20: #{net_forward.1} parent=11 // pred_fallthru
          _
        // Predicated region
        $region21: #{net_forward.1} parent=11 // pred_check
          %p305 = pneg %p111
        $region22: #{net_forward.1} parent=11 // pred_check_branch
          %307 = sbr.rel (%p305) target = $region24
        $region23: #{net_forward.1} parent=11 // pred_region
          %s309 = ssub.s32 10240, 10240
          %310 = vsyncadd [#allocation3], %s309
          %s311 = sshll.u32 [#allocation2], 4
          %s312 = int_to_ptr.vmem [resolvable:$true] %s311
          %317 = dma.hbm_to_vmem [thread:$0]  %s3, 10240, %s312, [#allocation3], 128, 128, 8
        $region24: #{net_forward.1} parent=11 // pred_fallthru
          _
        // Predicated region
        $region25: #{net_forward.1} parent=11 // pred_check
          %p318 = pneg %p132
        $region26: #{net_forward.1} parent=11 // pred_check_branch
          %320 = sbr.rel (%p318) target = $region28
        $region27: #{net_forward.1} parent=11 // pred_region
          _
        $region28: #{net_forward.1} parent=11 // pred_fallthru
          _
        // Predicated region
        $region29: #{net_forward.1} parent=11 // pred_check
          %p321 = pneg %p153
        $region30: #{net_forward.1} parent=11 // pred_check_branch
          %323 = sbr.rel (%p321) target = $region32
        $region31: #{net_forward.1} parent=11 // pred_region
          %s325 = ssub.s32 5120, 5120
          %326 = vsyncadd [#allocation6], %s325
          %s327 = sshll.u32 [#allocation5], 4
          %s328 = int_to_ptr.vmem [resolvable:$true] %s327
          %333 = dma.hbm_to_vmem [thread:$0]  %s5, 5120, %s328, [#allocation6], 64, 64, 4
        $region32: #{net_forward.1} parent=11 // pred_fallthru
          _
        // Predicated region
        $region33: #{net_forward.1} parent=11 // pred_check
          %p334 = pneg %p174
        $region34: #{net_forward.1} parent=11 // pred_check_branch
          %336 = sbr.rel (%p334) target = $region36
        $region35: #{net_forward.1} parent=11 // pred_region
          _
        $region36: #{net_forward.1} parent=11 // pred_fallthru
          _
        // Predicated region
        $region37: #{net_forward.1} parent=11 // pred_check
          %p337 = pneg %p195
        $region38: #{net_forward.1} parent=11 // pred_check_branch
          %339 = sbr.rel (%p337) target = $region40
        $region39: #{net_forward.1} parent=11 // pred_region
          _
        $region40: #{net_forward.1} parent=11 // pred_fallthru
          _
        // Predicated region
        $region41: #{net_forward.1} parent=11 // pred_check
          %p340 = pneg %p216
        $region42: #{net_forward.1} parent=11 // pred_check_branch
          %342 = sbr.rel (%p340) target = $region44
        $region43: #{net_forward.1} parent=11 // pred_region
          _
        $region44: #{net_forward.1} parent=11 // pred_fallthru
          _
        // Predicated region
        $region45: #{net_forward.1} parent=11 // pred_check
          %p343 = pneg %p237
        $region46: #{net_forward.1} parent=11 // pred_check_branch
          %345 = sbr.rel (%p343) target = $region48
        $region47: #{net_forward.1} parent=11 // pred_region
          %s347 = ssub.s32 1024, 1024
          %348 = vsyncadd [#allocation6], %s347
          %s349 = sshll.u32 [#allocation7], 4
          %s350 = int_to_ptr.vmem [resolvable:$true] %s349
          %355 = dma.hbm_to_vmem [thread:$0]  %s9, 1024, %s350, [#allocation6], 64, 64, 4
        $region48: #{net_forward.1} parent=11 // pred_fallthru
          _
        // Predicated region
        $region49: #{net_forward.1} parent=11 // pred_check
          %p356 = pneg %p258
        $region50: #{net_forward.1} parent=11 // pred_check_branch
          %358 = sbr.rel (%p356) target = $region52
        $region51: #{net_forward.1} parent=11 // pred_region
          _
        $region52: #{net_forward.1} parent=11 // pred_fallthru
          _
      $region12: #{net_forward.1} parent=5 // pred_fallthru
        _
      %p359 = scmp.lt.s32.totalorder %s22, 2
      // Predicated region
      $region53: #{net_forward.1} parent=5 // pred_check
        %p360 = pneg %p359
      $region54: #{net_forward.1} parent=5 // pred_check_branch
        %362 = sbr.rel (%p360) target = $region56
      $region55: #{net_forward.1} parent=5 // pred_region
        // Predicated region
        $region57: #{net_forward.1} parent=55 // pred_check
          %p363 = pneg %p42
        $region58: #{net_forward.1} parent=55 // pred_check_branch
          %365 = sbr.rel (%p363) target = $region60
        $region59: #{net_forward.1} parent=55 // pred_region
          %p366 = scmp.lt.s32.totalorder %s22, 1
          %s367 = scalar_select %p366, %s22, 1
          %s368 = smul.addr %s367, 4
          %s369 = smul.addr %s368, 4
          %s370 = scalar_lea.vmem %s0, %s369
        $region60: #{net_forward.1} parent=55 // pred_fallthru
          _
      $region56: #{net_forward.1} parent=5 // pred_fallthru
        _
      %p371 = scmp.le.s32.totalorder 1, %s22
      %p372 = scmp.lt.s32.totalorder %s22, 3
      %p373 = pnand %p371, %p372
      %p374 = pneg %p373
      // Predicated region
      $region61: #{net_forward.1} parent=5 // pred_check
        _
      $region62: #{net_forward.1} parent=5 // pred_check_branch
        %376 = sbr.rel (%p373) target = $region64
      $region63: #{net_forward.1} parent=5 // pred_region
        %s377 = ssub.s32 %s22, 1
        // Predicated region
        $region65: #{net_forward.1} parent=63 // pred_check
          %p378 = pneg %p111
        $region66: #{net_forward.1} parent=63 // pred_check_branch
          %380 = sbr.rel (%p378) target = $region68
        $region67: #{net_forward.1} parent=63 // pred_region
          %381 = dma.done [#allocation3], 10240
        $region68: #{net_forward.1} parent=63 // pred_fallthru
          _
        // Predicated region
        $region69: #{net_forward.1} parent=63 // pred_check
          %p382 = pneg %p153
        $region70: #{net_forward.1} parent=63 // pred_check_branch
          %384 = sbr.rel (%p382) target = $region72
        $region71: #{net_forward.1} parent=63 // pred_region
          %385 = dma.done [#allocation6], 5120
        $region72: #{net_forward.1} parent=63 // pred_fallthru
          _
        // Predicated region
        $region73: #{net_forward.1} parent=63 // pred_check
          %p386 = pneg %p237
        $region74: #{net_forward.1} parent=63 // pred_check_branch
          %388 = sbr.rel (%p386) target = $region76
        $region75: #{net_forward.1} parent=63 // pred_region
          %389 = dma.done [#allocation6], 1024
        $region76: #{net_forward.1} parent=63 // pred_fallthru
          _
        %p390 = scmp.lt.s32.totalorder %s27, 1
        %s391 = scalar_select %p390, %s27, 1
        %s392 = smul.addr %s391, 4
        %s393 = smul.addr %s392, 4
        %s394 = scalar_lea.vmem %s0, %s393
        %p395 = pneg %p48
        %p396 = pneg %p45
        %p397 = pneg %p69
        %p398 = pneg %p66
        %p399 = pneg %p90
        %p400 = pneg %p87
        %p401 = pneg %p111
        %p402 = pneg %p108
        %p403 = pneg %p132
        %p404 = pneg %p129
        %p405 = pneg %p153
        %p406 = pneg %p150
        %p407 = pneg %p174
        %p408 = pneg %p171
        %p409 = pneg %p195
        %p410 = pneg %p192
        %p411 = pneg %p216
        %p412 = pneg %p213
        %p413 = pneg %p237
        %p414 = pneg %p234
        %p415 = pneg %p258
        %p416 = pneg %p255
        %p417 = pneg %p284
        %p418 = pneg %p281
        %s419 = sand.u32 %s271, 1
        %s420 = scalar_lea.sflag [#allocation4], %s419
        %s421 = sand.u32 %s271, 1
        %s422 = scalar_lea.vmem [#allocation8], %s421
        %p423 = scmp.lt.s32.totalorder %s27, 1
        %s424 = scalar_select %p423, %s27, 1
        %s425 = smul.addr %s424, 4
        %s426 = smul.addr %s425, 4
        %s427 = scalar_lea.vmem %s0, %s426
        %v429 = vld [vmem:[%s1] sm:$0xff]
        %v430 = vld [vmem:[%s1 + $0x8] sm:$0xff]
        %v431 = vld [vmem:[%s1 + $0x10] sm:$0xff]
        %v432 = vld [vmem:[%s1 + $0x18] sm:$0xff]
        %v433 = vld [vmem:[%s1 + $0x20] sm:$0xff]
        %v434 = vld [vmem:[%s1 + $0x28] sm:$0xff]
        %v435 = vld [vmem:[%s1 + $0x30] sm:$0xff]
        %v436 = vld [vmem:[%s1 + $0x38] sm:$0xff]
        %v437 = vld [vmem:[%s1 + $0x40] sm:$0xff]
        %v438 = vld [vmem:[%s1 + $0x48] sm:$0xff]
        %v439 = vld [vmem:[%s1 + $0x50] sm:$0xff]
        %v440 = vld [vmem:[%s1 + $0x58] sm:$0xff]
        %v441 = vld [vmem:[%s1 + $0x60] sm:$0xff]
        %v442 = vld [vmem:[%s1 + $0x68] sm:$0xff]
        %v443 = vld [vmem:[%s1 + $0x70] sm:$0xff]
        %v444 = vld [vmem:[%s1 + $0x78] sm:$0xff]
        %v445 = vld [vmem:[%s1 + $0x80] sm:$0xff]
        %v446 = vld [vmem:[%s1 + $0x88] sm:$0xff]
        %v447 = vld [vmem:[%s1 + $0x90] sm:$0xff]
        %v448 = vld [vmem:[%s1 + $0x98] sm:$0xff]
        %v449 = vld [vmem:[%s1 + $0xa0] sm:$0xff]
        %v450 = vld [vmem:[%s1 + $0xa8] sm:$0xff]
        %v451 = vld [vmem:[%s1 + $0xb0] sm:$0xff]
        %v452 = vld [vmem:[%s1 + $0xb8] sm:$0xff]
        %v453 = vld [vmem:[%s1 + $0xc0] sm:$0xff]
        %v454 = vld [vmem:[%s1 + $0xc8] sm:$0xff]
        %v455 = vld [vmem:[%s1 + $0xd0] sm:$0xff]
        %v456 = vld [vmem:[%s1 + $0xd8] sm:$0xff]
        %v457 = vld [vmem:[%s1 + $0xe0] sm:$0xff]
        %v458 = vld [vmem:[%s1 + $0xe8] sm:$0xff]
        %v459 = vld [vmem:[%s1 + $0xf0] sm:$0xff]
        %v460 = vld [vmem:[%s1 + $0xf8] sm:$0xff]
        %v461 = vld [vmem:[%s1 + $0x100] sm:$0xff]
        %v462 = vld [vmem:[%s1 + $0x108] sm:$0xff]
        %v463 = vld [vmem:[%s1 + $0x110] sm:$0xff]
        %v464 = vld [vmem:[%s1 + $0x118] sm:$0xff]
        %v465 = vld [vmem:[%s1 + $0x120] sm:$0xff]
        %v466 = vld [vmem:[%s1 + $0x128] sm:$0xff]
        %v467 = vld [vmem:[%s1 + $0x130] sm:$0xff]
        %v468 = vld [vmem:[%s1 + $0x138] sm:$0xff]
        %v469 = vld [vmem:[%s1 + $0x140] sm:$0xff]
        %v470 = vld [vmem:[%s1 + $0x148] sm:$0xff]
        %v471 = vld [vmem:[%s1 + $0x150] sm:$0xff]
        %v472 = vld [vmem:[%s1 + $0x158] sm:$0xff]
        %v473 = vld [vmem:[%s1 + $0x160] sm:$0xff]
        %v474 = vld [vmem:[%s1 + $0x168] sm:$0xff]
        %v475 = vld [vmem:[%s1 + $0x170] sm:$0xff]
        %v476 = vld [vmem:[%s1 + $0x178] sm:$0xff]
        %v477 = vld [vmem:[%s1 + $0x180] sm:$0xff]
        %v478 = vld [vmem:[%s1 + $0x188] sm:$0xff]
        %v479 = vld [vmem:[%s1 + $0x190] sm:$0xff]
        %v480 = vld [vmem:[%s1 + $0x198] sm:$0xff]
        %v481 = vld [vmem:[%s1 + $0x1a0] sm:$0xff]
        %v482 = vld [vmem:[%s1 + $0x1a8] sm:$0xff]
        %v483 = vld [vmem:[%s1 + $0x1b0] sm:$0xff]
        %v484 = vld [vmem:[%s1 + $0x1b8] sm:$0xff]
        %v485 = vld [vmem:[%s1 + $0x1c0] sm:$0xff]
        %v486 = vld [vmem:[%s1 + $0x1c8] sm:$0xff]
        %v487 = vld [vmem:[%s1 + $0x1d0] sm:$0xff]
        %v488 = vld [vmem:[%s1 + $0x1d8] sm:$0xff]
        %v489 = vld [vmem:[%s1 + $0x1e0] sm:$0xff]
        %v490 = vld [vmem:[%s1 + $0x1e8] sm:$0xff]
        %v491 = vld [vmem:[%s1 + $0x1f0] sm:$0xff]
        %v492 = vld [vmem:[%s1 + $0x1f8] sm:$0xff]
        %v493 = vld [vmem:[%s1 + $0x200] sm:$0xff]
        %v494 = vld [vmem:[%s1 + $0x208] sm:$0xff]
        %v495 = vld [vmem:[%s1 + $0x210] sm:$0xff]
        %v496 = vld [vmem:[%s1 + $0x218] sm:$0xff]
        %v497 = vld [vmem:[%s1 + $0x220] sm:$0xff]
        %v498 = vld [vmem:[%s1 + $0x228] sm:$0xff]
        %v499 = vld [vmem:[%s1 + $0x230] sm:$0xff]
        %v500 = vld [vmem:[%s1 + $0x238] sm:$0xff]
        %v501 = vld [vmem:[%s1 + $0x240] sm:$0xff]
        %v502 = vld [vmem:[%s1 + $0x248] sm:$0xff]
        %v503 = vld [vmem:[%s1 + $0x250] sm:$0xff]
        %v504 = vld [vmem:[%s1 + $0x258] sm:$0xff]
        %v505 = vld [vmem:[%s1 + $0x260] sm:$0xff]
        %v506 = vld [vmem:[%s1 + $0x268] sm:$0xff]
        %v507 = vld [vmem:[%s1 + $0x270] sm:$0xff]
        %v508 = vld [vmem:[%s1 + $0x278] sm:$0xff]
        %v509 = vld [vmem:[#allocation2] sm:$0xff]
        %v510 = vld [vmem:[#allocation2 + $0x8] sm:$0xff]
        %v511 = vld [vmem:[#allocation2 + $0x10] sm:$0xff]
        %v512 = vld [vmem:[#allocation2 + $0x18] sm:$0xff]
        %v513 = vld [vmem:[#allocation2 + $0x20] sm:$0xff]
        %v514 = vld [vmem:[#allocation2 + $0x28] sm:$0xff]
        %v515 = vld [vmem:[#allocation2 + $0x30] sm:$0xff]
        %v516 = vld [vmem:[#allocation2 + $0x38] sm:$0xff]
        %v517 = vld [vmem:[#allocation2 + $0x40] sm:$0xff]
        %v518 = vld [vmem:[#allocation2 + $0x48] sm:$0xff]
        %v519 = vld [vmem:[#allocation2 + $0x50] sm:$0xff]
        %v520 = vld [vmem:[#allocation2 + $0x58] sm:$0xff]
        %v521 = vld [vmem:[#allocation2 + $0x60] sm:$0xff]
        %v522 = vld [vmem:[#allocation2 + $0x68] sm:$0xff]
        %v523 = vld [vmem:[#allocation2 + $0x70] sm:$0xff]
        %v524 = vld [vmem:[#allocation2 + $0x78] sm:$0xff]
        %v525 = vld [vmem:[#allocation2 + $0x80] sm:$0xff]
        %v526 = vld [vmem:[#allocation2 + $0x88] sm:$0xff]
        %v527 = vld [vmem:[#allocation2 + $0x90] sm:$0xff]
        %v528 = vld [vmem:[#allocation2 + $0x98] sm:$0xff]
        %v529 = vld [vmem:[#allocation2 + $0xa0] sm:$0xff]
        %v530 = vld [vmem:[#allocation2 + $0xa8] sm:$0xff]
        %v531 = vld [vmem:[#allocation2 + $0xb0] sm:$0xff]
        %v532 = vld [vmem:[#allocation2 + $0xb8] sm:$0xff]
        %v533 = vld [vmem:[#allocation2 + $0xc0] sm:$0xff]
        %v534 = vld [vmem:[#allocation2 + $0xc8] sm:$0xff]
        %v535 = vld [vmem:[#allocation2 + $0xd0] sm:$0xff]
        %v536 = vld [vmem:[#allocation2 + $0xd8] sm:$0xff]
        %v537 = vld [vmem:[#allocation2 + $0xe0] sm:$0xff]
        %v538 = vld [vmem:[#allocation2 + $0xe8] sm:$0xff]
        %v539 = vld [vmem:[#allocation2 + $0xf0] sm:$0xff]
        %v540 = vld [vmem:[#allocation2 + $0xf8] sm:$0xff]
        %v541 = vld [vmem:[#allocation2 + $0x100] sm:$0xff]
        %v542 = vld [vmem:[#allocation2 + $0x108] sm:$0xff]
        %v543 = vld [vmem:[#allocation2 + $0x110] sm:$0xff]
        %v544 = vld [vmem:[#allocation2 + $0x118] sm:$0xff]
        %v545 = vld [vmem:[#allocation2 + $0x120] sm:$0xff]
        %v546 = vld [vmem:[#allocation2 + $0x128] sm:$0xff]
        %v547 = vld [vmem:[#allocation2 + $0x130] sm:$0xff]
        %v548 = vld [vmem:[#allocation2 + $0x138] sm:$0xff]
        %v549 = vld [vmem:[#allocation2 + $0x140] sm:$0xff]
        %v550 = vld [vmem:[#allocation2 + $0x148] sm:$0xff]
        %v551 = vld [vmem:[#allocation2 + $0x150] sm:$0xff]
        %v552 = vld [vmem:[#allocation2 + $0x158] sm:$0xff]
        %v553 = vld [vmem:[#allocation2 + $0x160] sm:$0xff]
        %v554 = vld [vmem:[#allocation2 + $0x168] sm:$0xff]
        %v555 = vld [vmem:[#allocation2 + $0x170] sm:$0xff]
        %v556 = vld [vmem:[#allocation2 + $0x178] sm:$0xff]
        %v557 = vld [vmem:[#allocation2 + $0x180] sm:$0xff]
        %v558 = vld [vmem:[#allocation2 + $0x188] sm:$0xff]
        %v559 = vld [vmem:[#allocation2 + $0x190] sm:$0xff]
        %v560 = vld [vmem:[#allocation2 + $0x198] sm:$0xff]
        %v561 = vld [vmem:[#allocation2 + $0x1a0] sm:$0xff]
        %v562 = vld [vmem:[#allocation2 + $0x1a8] sm:$0xff]
        %v563 = vld [vmem:[#allocation2 + $0x1b0] sm:$0xff]
        %v564 = vld [vmem:[#allocation2 + $0x1b8] sm:$0xff]
        %v565 = vld [vmem:[#allocation2 + $0x1c0] sm:$0xff]
        %v566 = vld [vmem:[#allocation2 + $0x1c8] sm:$0xff]
        %v567 = vld [vmem:[#allocation2 + $0x1d0] sm:$0xff]
        %v568 = vld [vmem:[#allocation2 + $0x1d8] sm:$0xff]
        %v569 = vld [vmem:[#allocation2 + $0x1e0] sm:$0xff]
        %v570 = vld [vmem:[#allocation2 + $0x1e8] sm:$0xff]
        %v571 = vld [vmem:[#allocation2 + $0x1f0] sm:$0xff]
        %v572 = vld [vmem:[#allocation2 + $0x1f8] sm:$0xff]
        %v573 = vld [vmem:[#allocation2 + $0x200] sm:$0xff]
        %v574 = vld [vmem:[#allocation2 + $0x208] sm:$0xff]
        %v575 = vld [vmem:[#allocation2 + $0x210] sm:$0xff]
        %v576 = vld [vmem:[#allocation2 + $0x218] sm:$0xff]
        %v577 = vld [vmem:[#allocation2 + $0x220] sm:$0xff]
        %v578 = vld [vmem:[#allocation2 + $0x228] sm:$0xff]
        %v579 = vld [vmem:[#allocation2 + $0x230] sm:$0xff]
        %v580 = vld [vmem:[#allocation2 + $0x238] sm:$0xff]
        %v581 = vld [vmem:[#allocation2 + $0x240] sm:$0xff]
        %v582 = vld [vmem:[#allocation2 + $0x248] sm:$0xff]
        %v583 = vld [vmem:[#allocation2 + $0x250] sm:$0xff]
        %v584 = vld [vmem:[#allocation2 + $0x258] sm:$0xff]
        %v585 = vld [vmem:[#allocation2 + $0x260] sm:$0xff]
        %v586 = vld [vmem:[#allocation2 + $0x268] sm:$0xff]
        %v587 = vld [vmem:[#allocation2 + $0x270] sm:$0xff]
        %v588 = vld [vmem:[#allocation2 + $0x278] sm:$0xff]
        %v589 = vld [vmem:[%s7] sm:$0xf]
        %v590 = vld [vmem:[%s7 + $0x4] sm:$0xf]
        %v591 = vld [vmem:[%s7 + $0x8] sm:$0xf]
        %v592 = vld [vmem:[%s7 + $0xc] sm:$0xf]
        %v593 = vld [vmem:[%s7 + $0x10] sm:$0xf]
        %v594 = vld [vmem:[%s7 + $0x14] sm:$0xf]
        %v595 = vld [vmem:[%s7 + $0x18] sm:$0xf]
        %v596 = vld [vmem:[%s7 + $0x1c] sm:$0xf]
        %v597 = vld [vmem:[%s7 + $0x20] sm:$0xf]
        %v598 = vld [vmem:[%s7 + $0x24] sm:$0xf]
        %v599 = vld [vmem:[%s7 + $0x28] sm:$0xf]
        %v600 = vld [vmem:[%s7 + $0x2c] sm:$0xf]
        %v601 = vld [vmem:[%s7 + $0x30] sm:$0xf]
        %v602 = vld [vmem:[%s7 + $0x34] sm:$0xf]
        %v603 = vld [vmem:[%s7 + $0x38] sm:$0xf]
        %v604 = vld [vmem:[%s7 + $0x3c] sm:$0xf]
        %v605 = vld [vmem:[#allocation7] sm:$0xf]
        %v606 = vld [vmem:[#allocation7 + $0x4] sm:$0xf]
        %v607 = vld [vmem:[#allocation7 + $0x8] sm:$0xf]
        %v608 = vld [vmem:[#allocation7 + $0xc] sm:$0xf]
        %v609 = vld [vmem:[#allocation7 + $0x10] sm:$0xf]
        %v610 = vld [vmem:[#allocation7 + $0x14] sm:$0xf]
        %v611 = vld [vmem:[#allocation7 + $0x18] sm:$0xf]
        %v612 = vld [vmem:[#allocation7 + $0x1c] sm:$0xf]
        %v613 = vld [vmem:[#allocation7 + $0x20] sm:$0xf]
        %v614 = vld [vmem:[#allocation7 + $0x24] sm:$0xf]
        %v615 = vld [vmem:[#allocation7 + $0x28] sm:$0xf]
        %v616 = vld [vmem:[#allocation7 + $0x2c] sm:$0xf]
        %v617 = vld [vmem:[#allocation7 + $0x30] sm:$0xf]
        %v618 = vld [vmem:[#allocation7 + $0x34] sm:$0xf]
        %v619 = vld [vmem:[#allocation7 + $0x38] sm:$0xf]
        %v620 = vld [vmem:[#allocation7 + $0x3c] sm:$0xf]
        %v621 = vld [vmem:[%s2] sm:$0x1]
        %v622 = vld [vmem:[%s4] sm:$0x1]
        %v623 = vld [vmem:[%s6] sm:$0x1]
        %v624 = vld [vmem:[%s8] sm:$0x1]
        %v625 = vld [vmem:[%s10] sm:$0x1]
        %v626 = vld [vmem:[%s427] sm:$0xf]
        %v627 = vld [vmem:[%s427 + $0x4] sm:$0xf]
        %v628 = vld [vmem:[%s427 + $0x8] sm:$0xf]
        %v629 = vld [vmem:[%s427 + $0xc] sm:$0xf]
        %v630 = vunpack.c.l.bf16 %v626
        %v631 = vunpack.c.l.bf16 %v627
        %v632 = vunpack.c.l.bf16 %v628
        %v633 = vunpack.c.l.bf16 %v629
        %v635 = vrot.slane %v630, 1
        %v638 = vrot.slane %v631, 1
        %v640 = vpack.c.bf16 %v630, %v630
        %v641 = vpack.c.bf16 %v631, %v631
        %v642 = vpack.c.bf16 %v632, %v632
        %v643 = vpack.c.bf16 %v633, %v633
        %v644 = vpack.c.bf16 %v635, %v635
        %v645 = vpack.c.bf16 %v638, %v638
        %v726 = vunpack.c.l.b16 %v429
        %v727 = vunpack.c.h.b16 %v429
        %v728 = vunpack.c.l.b16 %v430
        %v729 = vunpack.c.h.b16 %v430
        %v730 = vunpack.c.l.b16 %v431
        %v731 = vunpack.c.h.b16 %v431
        %v732 = vunpack.c.l.b16 %v432
        %v733 = vunpack.c.h.b16 %v432
        %v734 = vunpack.c.l.b16 %v433
        %v735 = vunpack.c.h.b16 %v433
        %v736 = vunpack.c.l.b16 %v434
        %v737 = vunpack.c.h.b16 %v434
        %v738 = vunpack.c.l.b16 %v435
        %v739 = vunpack.c.h.b16 %v435
        %v740 = vunpack.c.l.b16 %v436
        %v741 = vunpack.c.h.b16 %v436
        %v742 = vunpack.c.l.b16 %v437
        %v743 = vunpack.c.h.b16 %v437
        %v744 = vunpack.c.l.b16 %v438
        %v745 = vunpack.c.h.b16 %v438
        %v746 = vunpack.c.l.b16 %v439
        %v747 = vunpack.c.h.b16 %v439
        %v748 = vunpack.c.l.b16 %v440
        %v749 = vunpack.c.h.b16 %v440
        %v750 = vunpack.c.l.b16 %v441
        %v751 = vunpack.c.h.b16 %v441
        %v752 = vunpack.c.l.b16 %v442
        %v753 = vunpack.c.h.b16 %v442
        %v754 = vunpack.c.l.b16 %v443
        %v755 = vunpack.c.h.b16 %v443
        %v756 = vunpack.c.l.b16 %v444
        %v757 = vunpack.c.h.b16 %v444
        %v758 = vunpack.c.l.b16 %v445
        %v759 = vunpack.c.h.b16 %v445
        %v760 = vunpack.c.l.b16 %v446
        %v761 = vunpack.c.h.b16 %v446
        %v762 = vunpack.c.l.b16 %v447
        %v763 = vunpack.c.h.b16 %v447
        %v764 = vunpack.c.l.b16 %v448
        %v765 = vunpack.c.h.b16 %v448
        %v766 = vunpack.c.l.b16 %v449
        %v767 = vunpack.c.h.b16 %v449
        %v768 = vunpack.c.l.b16 %v450
        %v769 = vunpack.c.h.b16 %v450
        %v770 = vunpack.c.l.b16 %v451
        %v771 = vunpack.c.h.b16 %v451
        %v772 = vunpack.c.l.b16 %v452
        %v773 = vunpack.c.h.b16 %v452
        %v774 = vunpack.c.l.b16 %v453
        %v775 = vunpack.c.h.b16 %v453
        %v776 = vunpack.c.l.b16 %v454
        %v777 = vunpack.c.h.b16 %v454
        %v778 = vunpack.c.l.b16 %v455
        %v779 = vunpack.c.h.b16 %v455
        %v780 = vunpack.c.l.b16 %v456
        %v781 = vunpack.c.h.b16 %v456
        %v782 = vunpack.c.l.b16 %v457
        %v783 = vunpack.c.h.b16 %v457
        %v784 = vunpack.c.l.b16 %v458
        %v785 = vunpack.c.h.b16 %v458
        %v786 = vunpack.c.l.b16 %v459
        %v787 = vunpack.c.h.b16 %v459
        %v788 = vunpack.c.l.b16 %v460
        %v789 = vunpack.c.h.b16 %v460
        %v790 = vunpack.c.l.b16 %v461
        %v791 = vunpack.c.h.b16 %v461
        %v792 = vunpack.c.l.b16 %v462
        %v793 = vunpack.c.h.b16 %v462
        %v794 = vunpack.c.l.b16 %v463
        %v795 = vunpack.c.h.b16 %v463
        %v796 = vunpack.c.l.b16 %v464
        %v797 = vunpack.c.h.b16 %v464
        %v798 = vunpack.c.l.b16 %v465
        %v799 = vunpack.c.h.b16 %v465
        %v800 = vunpack.c.l.b16 %v466
        %v801 = vunpack.c.h.b16 %v466
        %v802 = vunpack.c.l.b16 %v467
        %v803 = vunpack.c.h.b16 %v467
        %v804 = vunpack.c.l.b16 %v468
        %v805 = vunpack.c.h.b16 %v468
        %v806 = vunpack.c.l.b16 %v469
        %v807 = vunpack.c.h.b16 %v469
        %v808 = vunpack.c.l.b16 %v470
        %v809 = vunpack.c.h.b16 %v470
        %v810 = vunpack.c.l.b16 %v471
        %v811 = vunpack.c.h.b16 %v471
        %v812 = vunpack.c.l.b16 %v472
        %v813 = vunpack.c.h.b16 %v472
        %v814 = vunpack.c.l.b16 %v473
        %v815 = vunpack.c.h.b16 %v473
        %v816 = vunpack.c.l.b16 %v474
        %v817 = vunpack.c.h.b16 %v474
        %v818 = vunpack.c.l.b16 %v475
        %v819 = vunpack.c.h.b16 %v475
        %v820 = vunpack.c.l.b16 %v476
        %v821 = vunpack.c.h.b16 %v476
        %v822 = vunpack.c.l.b16 %v477
        %v823 = vunpack.c.h.b16 %v477
        %v824 = vunpack.c.l.b16 %v478
        %v825 = vunpack.c.h.b16 %v478
        %v826 = vunpack.c.l.b16 %v479
        %v827 = vunpack.c.h.b16 %v479
        %v828 = vunpack.c.l.b16 %v480
        %v829 = vunpack.c.h.b16 %v480
        %v830 = vunpack.c.l.b16 %v481
        %v831 = vunpack.c.h.b16 %v481
        %v832 = vunpack.c.l.b16 %v482
        %v833 = vunpack.c.h.b16 %v482
        %v834 = vunpack.c.l.b16 %v483
        %v835 = vunpack.c.h.b16 %v483
        %v836 = vunpack.c.l.b16 %v484
        %v837 = vunpack.c.h.b16 %v484
        %v838 = vunpack.c.l.b16 %v485
        %v839 = vunpack.c.h.b16 %v485
        %v840 = vunpack.c.l.b16 %v486
        %v841 = vunpack.c.h.b16 %v486
        %v842 = vunpack.c.l.b16 %v487
        %v843 = vunpack.c.h.b16 %v487
        %v844 = vunpack.c.l.b16 %v488
        %v845 = vunpack.c.h.b16 %v488
        %v846 = vunpack.c.l.b16 %v489
        %v847 = vunpack.c.h.b16 %v489
        %v848 = vunpack.c.l.b16 %v490
        %v849 = vunpack.c.h.b16 %v490
        %v850 = vunpack.c.l.b16 %v491
        %v851 = vunpack.c.h.b16 %v491
        %v852 = vunpack.c.l.b16 %v492
        %v853 = vunpack.c.h.b16 %v492
        %v854 = vunpack.c.l.b16 %v493
        %v855 = vunpack.c.h.b16 %v493
        %v856 = vunpack.c.l.b16 %v494
        %v857 = vunpack.c.h.b16 %v494
        %v858 = vunpack.c.l.b16 %v495
        %v859 = vunpack.c.h.b16 %v495
        %v860 = vunpack.c.l.b16 %v496
        %v861 = vunpack.c.h.b16 %v496
        %v862 = vunpack.c.l.b16 %v497
        %v863 = vunpack.c.h.b16 %v497
        %v864 = vunpack.c.l.b16 %v498
        %v865 = vunpack.c.h.b16 %v498
        %v866 = vunpack.c.l.b16 %v499
        %v867 = vunpack.c.h.b16 %v499
        %v868 = vunpack.c.l.b16 %v500
        %v869 = vunpack.c.h.b16 %v500
        %v870 = vunpack.c.l.b16 %v501
        %v871 = vunpack.c.h.b16 %v501
        %v872 = vunpack.c.l.b16 %v502
        %v873 = vunpack.c.h.b16 %v502
        %v874 = vunpack.c.l.b16 %v503
        %v875 = vunpack.c.h.b16 %v503
        %v876 = vunpack.c.l.b16 %v504
        %v877 = vunpack.c.h.b16 %v504
        %v878 = vunpack.c.l.b16 %v505
        %v879 = vunpack.c.h.b16 %v505
        %v880 = vunpack.c.l.b16 %v506
        %v881 = vunpack.c.h.b16 %v506
        %v882 = vunpack.c.l.b16 %v507
        %v883 = vunpack.c.h.b16 %v507
        %v884 = vunpack.c.l.b16 %v508
        %v885 = vunpack.c.h.b16 %v508
        %v886 = vpack.c.b16 %v728, %v726
        %v887 = vpack.c.b16 %v729, %v727
        %v888 = vpack.c.b16 %v732, %v730
        %v889 = vpack.c.b16 %v733, %v731
        %v890 = vpack.c.b16 %v736, %v734
        %v891 = vpack.c.b16 %v737, %v735
        %v892 = vpack.c.b16 %v740, %v738
        %v893 = vpack.c.b16 %v741, %v739
        %v894 = vpack.c.b16 %v744, %v742
        %v895 = vpack.c.b16 %v745, %v743
        %v896 = vpack.c.b16 %v748, %v746
        %v897 = vpack.c.b16 %v749, %v747
        %v898 = vpack.c.b16 %v752, %v750
        %v899 = vpack.c.b16 %v753, %v751
        %v900 = vpack.c.b16 %v756, %v754
        %v901 = vpack.c.b16 %v757, %v755
        %v902 = vpack.c.b16 %v760, %v758
        %v903 = vpack.c.b16 %v761, %v759
        %v904 = vpack.c.b16 %v764, %v762
        %v905 = vpack.c.b16 %v765, %v763
        %v906 = vpack.c.b16 %v768, %v766
        %v907 = vpack.c.b16 %v769, %v767
        %v908 = vpack.c.b16 %v772, %v770
        %v909 = vpack.c.b16 %v773, %v771
        %v910 = vpack.c.b16 %v776, %v774
        %v911 = vpack.c.b16 %v777, %v775
        %v912 = vpack.c.b16 %v780, %v778
        %v913 = vpack.c.b16 %v781, %v779
        %v914 = vpack.c.b16 %v784, %v782
        %v915 = vpack.c.b16 %v785, %v783
        %v916 = vpack.c.b16 %v788, %v786
        %v917 = vpack.c.b16 %v789, %v787
        %v918 = vpack.c.b16 %v792, %v790
        %v919 = vpack.c.b16 %v793, %v791
        %v920 = vpack.c.b16 %v796, %v794
        %v921 = vpack.c.b16 %v797, %v795
        %v922 = vpack.c.b16 %v800, %v798
        %v923 = vpack.c.b16 %v801, %v799
        %v924 = vpack.c.b16 %v804, %v802
        %v925 = vpack.c.b16 %v805, %v803
        %v926 = vpack.c.b16 %v808, %v806
        %v927 = vpack.c.b16 %v809, %v807
        %v928 = vpack.c.b16 %v812, %v810
        %v929 = vpack.c.b16 %v813, %v811
        %v930 = vpack.c.b16 %v816, %v814
        %v931 = vpack.c.b16 %v817, %v815
        %v932 = vpack.c.b16 %v820, %v818
        %v933 = vpack.c.b16 %v821, %v819
        %v934 = vpack.c.b16 %v824, %v822
        %v935 = vpack.c.b16 %v825, %v823
        %v936 = vpack.c.b16 %v828, %v826
        %v937 = vpack.c.b16 %v829, %v827
        %v938 = vpack.c.b16 %v832, %v830
        %v939 = vpack.c.b16 %v833, %v831
        %v940 = vpack.c.b16 %v836, %v834
        %v941 = vpack.c.b16 %v837, %v835
        %v942 = vpack.c.b16 %v840, %v838
        %v943 = vpack.c.b16 %v841, %v839
        %v944 = vpack.c.b16 %v844, %v842
        %v945 = vpack.c.b16 %v845, %v843
        %v946 = vpack.c.b16 %v848, %v846
        %v947 = vpack.c.b16 %v849, %v847
        %v948 = vpack.c.b16 %v852, %v850
        %v949 = vpack.c.b16 %v853, %v851
        %v950 = vpack.c.b16 %v856, %v854
        %v951 = vpack.c.b16 %v857, %v855
        %v952 = vpack.c.b16 %v860, %v858
        %v953 = vpack.c.b16 %v861, %v859
        %v954 = vpack.c.b16 %v864, %v862
        %v955 = vpack.c.b16 %v865, %v863
        %v956 = vpack.c.b16 %v868, %v866
        %v957 = vpack.c.b16 %v869, %v867
        %v958 = vpack.c.b16 %v872, %v870
        %v959 = vpack.c.b16 %v873, %v871
        %v960 = vpack.c.b16 %v876, %v874
        %v961 = vpack.c.b16 %v877, %v875
        %v962 = vpack.c.b16 %v880, %v878
        %v963 = vpack.c.b16 %v881, %v879
        %v964 = vpack.c.b16 %v884, %v882
        %v965 = vpack.c.b16 %v885, %v883
        %1046 = vmatprep.subr.bf16.mxu0 %v901
        %1047 = vmatpush1.bf16.msra.mxu0 %v900
        %1048 = vmatprep.subr.bf16.mxu0 %v899
        %1049 = vmatpush1.bf16.msra.mxu0 %v898
        %1050 = vmatprep.subr.bf16.mxu0 %v897
        %1051 = vmatpush1.bf16.msra.mxu0 %v896
        %1052 = vmatprep.subr.bf16.mxu0 %v895
        %1053 = vmatpush1.bf16.msra.mxu0 %v894
        %1054 = vmatprep.subr.bf16.mxu0 %v893
        %1055 = vmatpush1.bf16.msra.mxu0 %v892
        %1056 = vmatprep.subr.bf16.mxu0 %v891
        %1057 = vmatpush1.bf16.msra.mxu0 %v890
        %1058 = vmatprep.subr.bf16.mxu0 %v889
        %1059 = vmatpush1.bf16.msra.mxu0 %v888
        %1060 = vmatprep.subr.bf16.mxu0 %v887
        %1061 = vmatpush1.bf16.msra.mxu0 %v886
        %1062 = vmatprep.subr.bf16.mxu0 %v917
        %1063 = vmatpush2.bf16.msra.mxu0 %v916
        %1064 = vmatprep.subr.bf16.mxu0 %v915
        %1065 = vmatpush2.bf16.msra.mxu0 %v914
        %1066 = vmatprep.subr.bf16.mxu0 %v913
        %1067 = vmatpush2.bf16.msra.mxu0 %v912
        %1068 = vmatprep.subr.bf16.mxu0 %v911
        %1069 = vmatpush2.bf16.msra.mxu0 %v910
        %1070 = vmatprep.subr.bf16.mxu0 %v909
        %1071 = vmatpush2.bf16.msra.mxu0 %v908
        %1072 = vmatprep.subr.bf16.mxu0 %v907
        %1073 = vmatpush2.bf16.msra.mxu0 %v906
        %1074 = vmatprep.subr.bf16.mxu0 %v905
        %1075 = vmatpush2.bf16.msra.mxu0 %v904
        %1076 = vmatprep.subr.bf16.mxu0 %v903
        %1077 = vmatpush2.bf16.msra.mxu0 %v902
        %1078 = vmatprep.mubr.bf16.mxu0 %v641
        %1079 = vmatmul.mubr.bf16.gmra.mxu0 %v640
        %v1080 = vpop.f32.mrf.mxu0
        %v1081 = vadd.f32 0.0, %v1080
        %v1082 = vpop.f32.mrf.mxu0
        %v1083 = vadd.f32 0.0, %v1082
        %v1084 = vpop.f32.mrf.mxu0
        %v1085 = vpop.f32.mrf.mxu0
        %1086 = vdwg.mxu0
        %1087 = vmatprep.subr.bf16.mxu0 %v933
        %1088 = vmatpush1.bf16.msra.mxu0 %v932
        %1089 = vmatprep.subr.bf16.mxu0 %v931
        %1090 = vmatpush1.bf16.msra.mxu0 %v930
        %1091 = vmatprep.subr.bf16.mxu0 %v929
        %1092 = vmatpush1.bf16.msra.mxu0 %v928
        %1093 = vmatprep.subr.bf16.mxu0 %v927
        %1094 = vmatpush1.bf16.msra.mxu0 %v926
        %1095 = vmatprep.subr.bf16.mxu0 %v925
        %1096 = vmatpush1.bf16.msra.mxu0 %v924
        %1097 = vmatprep.subr.bf16.mxu0 %v923
        %1098 = vmatpush1.bf16.msra.mxu0 %v922
        %1099 = vmatprep.subr.bf16.mxu0 %v921
        %1100 = vmatpush1.bf16.msra.mxu0 %v920
        %1101 = vmatprep.subr.bf16.mxu0 %v919
        %1102 = vmatpush1.bf16.msra.mxu0 %v918
        %1103 = vmatprep.subr.bf16.mxu0 %v949
        %1104 = vmatpush2.bf16.msra.mxu0 %v948
        %1105 = vmatprep.subr.bf16.mxu0 %v947
        %1106 = vmatpush2.bf16.msra.mxu0 %v946
        %1107 = vmatprep.subr.bf16.mxu0 %v945
        %1108 = vmatpush2.bf16.msra.mxu0 %v944
        %1109 = vmatprep.subr.bf16.mxu0 %v943
        %1110 = vmatpush2.bf16.msra.mxu0 %v942
        %1111 = vmatprep.subr.bf16.mxu0 %v941
        %1112 = vmatpush2.bf16.msra.mxu0 %v940
        %1113 = vmatprep.subr.bf16.mxu0 %v939
        %1114 = vmatpush2.bf16.msra.mxu0 %v938
        %1115 = vmatprep.subr.bf16.mxu0 %v937
        %1116 = vmatpush2.bf16.msra.mxu0 %v936
        %1117 = vmatprep.subr.bf16.mxu0 %v935
        %1118 = vmatpush2.bf16.msra.mxu0 %v934
        %1119 = vmatprep.mubr.bf16.mxu0 %v643
        %1120 = vmatmul.mubr.bf16.gmra.mxu0 %v642
        %v1121 = vpop.f32.mrf.mxu0
        %v1122 = vadd.f32 %v1081, %v1121
        %v1123 = vpop.f32.mrf.mxu0
        %v1124 = vadd.f32 %v1083, %v1123
        %v1125 = vpop.f32.mrf.mxu0
        %v1126 = vpop.f32.mrf.mxu0
        %1127 = vdwg.mxu0
        %1128 = vmatprep.subr.bf16.mxu0 %v965
        %1129 = vmatpush1.bf16.msra.mxu0 %v964
        %1130 = vmatprep.subr.bf16.mxu0 %v963
        %1131 = vmatpush1.bf16.msra.mxu0 %v962
        %1132 = vmatprep.subr.bf16.mxu0 %v961
        %1133 = vmatpush1.bf16.msra.mxu0 %v960
        %1134 = vmatprep.subr.bf16.mxu0 %v959
        %1135 = vmatpush1.bf16.msra.mxu0 %v958
        %1136 = vmatprep.subr.bf16.mxu0 %v957
        %1137 = vmatpush1.bf16.msra.mxu0 %v956
        %1138 = vmatprep.subr.bf16.mxu0 %v955
        %1139 = vmatpush1.bf16.msra.mxu0 %v954
        %1140 = vmatprep.subr.bf16.mxu0 %v953
        %1141 = vmatpush1.bf16.msra.mxu0 %v952
        %1142 = vmatprep.subr.bf16.mxu0 %v951
        %1143 = vmatpush1.bf16.msra.mxu0 %v950
        %1144 = vmatprep.subr.bf16.mxu0 0
        %1145 = vmatpush2.bf16.msra.mxu0 0
        %1146 = vmatprep.subr.bf16.mxu0 0
        %1147 = vmatpush2.bf16.msra.mxu0 0
        %1148 = vmatprep.subr.bf16.mxu0 0
        %1149 = vmatpush2.bf16.msra.mxu0 0
        %1150 = vmatprep.subr.bf16.mxu0 0
        %1151 = vmatpush2.bf16.msra.mxu0 0
        %1152 = vmatprep.subr.bf16.mxu0 0
        %1153 = vmatpush2.bf16.msra.mxu0 0
        %1154 = vmatprep.subr.bf16.mxu0 0
        %1155 = vmatpush2.bf16.msra.mxu0 0
        %1156 = vmatprep.subr.bf16.mxu0 0
        %1157 = vmatpush2.bf16.msra.mxu0 0
        %1158 = vmatprep.subr.bf16.mxu0 0
        %1159 = vmatpush2.bf16.msra.mxu0 0
        %1160 = vmatprep.mubr.bf16.mxu0 0
        %1161 = vmatmul.mubr.bf16.gmra.mxu0 %v644
        %v1162 = vpop.f32.mrf.mxu0
        %v1163 = vadd.f32 %v1122, %v1162
        %v1164 = vpop.f32.mrf.mxu0
        %v1165 = vadd.f32 %v1124, %v1164
        %v1166 = vpop.f32.mrf.mxu0
        %v1167 = vpop.f32.mrf.mxu0
        %1168 = vdwg.mxu0
        %1169 = vmatprep.subr.bf16.mxu0 %v901
        %1170 = vmatpush1.bf16.msra.mxu0 %v900
        %1171 = vmatprep.subr.bf16.mxu0 %v899
        %1172 = vmatpush1.bf16.msra.mxu0 %v898
        %1173 = vmatprep.subr.bf16.mxu0 %v897
        %1174 = vmatpush1.bf16.msra.mxu0 %v896
        %1175 = vmatprep.subr.bf16.mxu0 %v895
        %1176 = vmatpush1.bf16.msra.mxu0 %v894
        %1177 = vmatprep.subr.bf16.mxu0 %v893
        %1178 = vmatpush1.bf16.msra.mxu0 %v892
        %1179 = vmatprep.subr.bf16.mxu0 %v891
        %1180 = vmatpush1.bf16.msra.mxu0 %v890
        %1181 = vmatprep.subr.bf16.mxu0 %v889
        %1182 = vmatpush1.bf16.msra.mxu0 %v888
        %1183 = vmatprep.subr.bf16.mxu0 %v887
        %1184 = vmatpush1.bf16.msra.mxu0 %v886
        %1185 = vmatprep.subr.bf16.mxu0 %v917
        %1186 = vmatpush2.bf16.msra.mxu0 %v916
        %1187 = vmatprep.subr.bf16.mxu0 %v915
        %1188 = vmatpush2.bf16.msra.mxu0 %v914
        %1189 = vmatprep.subr.bf16.mxu0 %v913
        %1190 = vmatpush2.bf16.msra.mxu0 %v912
        %1191 = vmatprep.subr.bf16.mxu0 %v911
        %1192 = vmatpush2.bf16.msra.mxu0 %v910
        %1193 = vmatprep.subr.bf16.mxu0 %v909
        %1194 = vmatpush2.bf16.msra.mxu0 %v908
        %1195 = vmatprep.subr.bf16.mxu0 %v907
        %1196 = vmatpush2.bf16.msra.mxu0 %v906
        %1197 = vmatprep.subr.bf16.mxu0 %v905
        %1198 = vmatpush2.bf16.msra.mxu0 %v904
        %1199 = vmatprep.subr.bf16.mxu0 %v903
        %1200 = vmatpush2.bf16.msra.mxu0 %v902
        %1201 = vmatprep.mubr.bf16.mxu0 %v642
        %1202 = vmatmul.mubr.bf16.gmra.mxu0 %v641
        %v1203 = vpop.f32.mrf.mxu0
        %v1204 = vadd.f32 0.0, %v1203
        %v1205 = vpop.f32.mrf.mxu0
        %v1206 = vadd.f32 0.0, %v1205
        %v1207 = vpop.f32.mrf.mxu0
        %v1208 = vpop.f32.mrf.mxu0
        %1209 = vdwg.mxu0
        %1210 = vmatprep.subr.bf16.mxu0 %v933
        %1211 = vmatpush1.bf16.msra.mxu0 %v932
        %1212 = vmatprep.subr.bf16.mxu0 %v931
        %1213 = vmatpush1.bf16.msra.mxu0 %v930
        %1214 = vmatprep.subr.bf16.mxu0 %v929
        %1215 = vmatpush1.bf16.msra.mxu0 %v928
        %1216 = vmatprep.subr.bf16.mxu0 %v927
        %1217 = vmatpush1.bf16.msra.mxu0 %v926
        %1218 = vmatprep.subr.bf16.mxu0 %v925
        %1219 = vmatpush1.bf16.msra.mxu0 %v924
        %1220 = vmatprep.subr.bf16.mxu0 %v923
        %1221 = vmatpush1.bf16.msra.mxu0 %v922
        %1222 = vmatprep.subr.bf16.mxu0 %v921
        %1223 = vmatpush1.bf16.msra.mxu0 %v920
        %1224 = vmatprep.subr.bf16.mxu0 %v919
        %1225 = vmatpush1.bf16.msra.mxu0 %v918
        %1226 = vmatprep.subr.bf16.mxu0 %v949
        %1227 = vmatpush2.bf16.msra.mxu0 %v948
        %1228 = vmatprep.subr.bf16.mxu0 %v947
        %1229 = vmatpush2.bf16.msra.mxu0 %v946
        %1230 = vmatprep.subr.bf16.mxu0 %v945
        %1231 = vmatpush2.bf16.msra.mxu0 %v944
        %1232 = vmatprep.subr.bf16.mxu0 %v943
        %1233 = vmatpush2.bf16.msra.mxu0 %v942
        %1234 = vmatprep.subr.bf16.mxu0 %v941
        %1235 = vmatpush2.bf16.msra.mxu0 %v940
        %1236 = vmatprep.subr.bf16.mxu0 %v939
        %1237 = vmatpush2.bf16.msra.mxu0 %v938
        %1238 = vmatprep.subr.bf16.mxu0 %v937
        %1239 = vmatpush2.bf16.msra.mxu0 %v936
        %1240 = vmatprep.subr.bf16.mxu0 %v935
        %1241 = vmatpush2.bf16.msra.mxu0 %v934
        %1242 = vmatprep.mubr.bf16.mxu0 %v644
        %1243 = vmatmul.mubr.bf16.gmra.mxu0 %v643
        %v1244 = vpop.f32.mrf.mxu0
        %v1245 = vadd.f32 %v1204, %v1244
        %v1246 = vpop.f32.mrf.mxu0
        %v1247 = vadd.f32 %v1206, %v1246
        %v1248 = vpop.f32.mrf.mxu0
        %v1249 = vpop.f32.mrf.mxu0
        %1250 = vdwg.mxu0
        %1251 = vmatprep.subr.bf16.mxu0 %v965
        %1252 = vmatpush1.bf16.msra.mxu0 %v964
        %1253 = vmatprep.subr.bf16.mxu0 %v963
        %1254 = vmatpush1.bf16.msra.mxu0 %v962
        %1255 = vmatprep.subr.bf16.mxu0 %v961
        %1256 = vmatpush1.bf16.msra.mxu0 %v960
        %1257 = vmatprep.subr.bf16.mxu0 %v959
        %1258 = vmatpush1.bf16.msra.mxu0 %v958
        %1259 = vmatprep.subr.bf16.mxu0 %v957
        %1260 = vmatpush1.bf16.msra.mxu0 %v956
        %1261 = vmatprep.subr.bf16.mxu0 %v955
        %1262 = vmatpush1.bf16.msra.mxu0 %v954
        %1263 = vmatprep.subr.bf16.mxu0 %v953
        %1264 = vmatpush1.bf16.msra.mxu0 %v952
        %1265 = vmatprep.subr.bf16.mxu0 %v951
        %1266 = vmatpush1.bf16.msra.mxu0 %v950
        %1267 = vmatprep.subr.bf16.mxu0 0
        %1268 = vmatpush2.bf16.msra.mxu0 0
        %1269 = vmatprep.subr.bf16.mxu0 0
        %1270 = vmatpush2.bf16.msra.mxu0 0
        %1271 = vmatprep.subr.bf16.mxu0 0
        %1272 = vmatpush2.bf16.msra.mxu0 0
        %1273 = vmatprep.subr.bf16.mxu0 0
        %1274 = vmatpush2.bf16.msra.mxu0 0
        %1275 = vmatprep.subr.bf16.mxu0 0
        %1276 = vmatpush2.bf16.msra.mxu0 0
        %1277 = vmatprep.subr.bf16.mxu0 0
        %1278 = vmatpush2.bf16.msra.mxu0 0
        %1279 = vmatprep.subr.bf16.mxu0 0
        %1280 = vmatpush2.bf16.msra.mxu0 0
        %1281 = vmatprep.subr.bf16.mxu0 0
        %1282 = vmatpush2.bf16.msra.mxu0 0
        %1283 = vmatprep.mubr.bf16.mxu0 0
        %1284 = vmatmul.mubr.bf16.gmra.mxu0 %v645
        %v1285 = vpop.f32.mrf.mxu0
        %v1286 = vadd.f32 %v1245, %v1285
        %v1287 = vpop.f32.mrf.mxu0
        %v1288 = vadd.f32 %v1247, %v1287
        %v1289 = vpop.f32.mrf.mxu0
        %v1290 = vpop.f32.mrf.mxu0
        %1291 = vdwg.mxu0
        %v1292 = vmax.f32 %v1163, %v1286
        %v1293 = vmax.f32 %v1165, %v1288
        %v1294 = vmax.f32 %v1292, %v1293
        %v1296 = vlaneseq
        %v1297 = vshrl.u32 %v1296, 7
        %v1298 = vsub.s32 0, %v1297
        %v1299 = vrot.slane %v621, %v1298
        %v1301 = vadd.f32 %v1294, %v1299
        %v1302 = vmax.f32 %v1301, 0.0
        %v1304 = vrot.slane %v632, 1
        %v1307 = vrot.slane %v633, 1
        %v1309 = vpack.c.bf16 %v1304, %v1304
        %v1310 = vpack.c.bf16 %v1307, %v1307
        %1311 = vmatprep.subr.bf16.mxu0 %v901
        %1312 = vmatpush1.bf16.msra.mxu0 %v900
        %1313 = vmatprep.subr.bf16.mxu0 %v899
        %1314 = vmatpush1.bf16.msra.mxu0 %v898
        %1315 = vmatprep.subr.bf16.mxu0 %v897
        %1316 = vmatpush1.bf16.msra.mxu0 %v896
        %1317 = vmatprep.subr.bf16.mxu0 %v895
        %1318 = vmatpush1.bf16.msra.mxu0 %v894
        %1319 = vmatprep.subr.bf16.mxu0 %v893
        %1320 = vmatpush1.bf16.msra.mxu0 %v892
        %1321 = vmatprep.subr.bf16.mxu0 %v891
        %1322 = vmatpush1.bf16.msra.mxu0 %v890
        %1323 = vmatprep.subr.bf16.mxu0 %v889
        %1324 = vmatpush1.bf16.msra.mxu0 %v888
        %1325 = vmatprep.subr.bf16.mxu0 %v887
        %1326 = vmatpush1.bf16.msra.mxu0 %v886
        %1327 = vmatprep.subr.bf16.mxu0 %v917
        %1328 = vmatpush2.bf16.msra.mxu0 %v916
        %1329 = vmatprep.subr.bf16.mxu0 %v915
        %1330 = vmatpush2.bf16.msra.mxu0 %v914
        %1331 = vmatprep.subr.bf16.mxu0 %v913
        %1332 = vmatpush2.bf16.msra.mxu0 %v912
        %1333 = vmatprep.subr.bf16.mxu0 %v911
        %1334 = vmatpush2.bf16.msra.mxu0 %v910
        %1335 = vmatprep.subr.bf16.mxu0 %v909
        %1336 = vmatpush2.bf16.msra.mxu0 %v908
        %1337 = vmatprep.subr.bf16.mxu0 %v907
        %1338 = vmatpush2.bf16.msra.mxu0 %v906
        %1339 = vmatprep.subr.bf16.mxu0 %v905
        %1340 = vmatpush2.bf16.msra.mxu0 %v904
        %1341 = vmatprep.subr.bf16.mxu0 %v903
        %1342 = vmatpush2.bf16.msra.mxu0 %v902
        %1343 = vmatprep.mubr.bf16.mxu0 %v643
        %1344 = vmatmul.mubr.bf16.gmra.mxu0 %v642
        %v1345 = vpop.f32.mrf.mxu0
        %v1346 = vadd.f32 0.0, %v1345
        %v1347 = vpop.f32.mrf.mxu0
        %v1348 = vadd.f32 0.0, %v1347
        %v1349 = vpop.f32.mrf.mxu0
        %v1350 = vpop.f32.mrf.mxu0
        %1351 = vdwg.mxu0
        %1352 = vmatprep.subr.bf16.mxu0 %v933
        %1353 = vmatpush1.bf16.msra.mxu0 %v932
        %1354 = vmatprep.subr.bf16.mxu0 %v931
        %1355 = vmatpush1.bf16.msra.mxu0 %v930
        %1356 = vmatprep.subr.bf16.mxu0 %v929
        %1357 = vmatpush1.bf16.msra.mxu0 %v928
        %1358 = vmatprep.subr.bf16.mxu0 %v927
        %1359 = vmatpush1.bf16.msra.mxu0 %v926
        %1360 = vmatprep.subr.bf16.mxu0 %v925
        %1361 = vmatpush1.bf16.msra.mxu0 %v924
        %1362 = vmatprep.subr.bf16.mxu0 %v923
        %1363 = vmatpush1.bf16.msra.mxu0 %v922
        %1364 = vmatprep.subr.bf16.mxu0 %v921
        %1365 = vmatpush1.bf16.msra.mxu0 %v920
        %1366 = vmatprep.subr.bf16.mxu0 %v919
        %1367 = vmatpush1.bf16.msra.mxu0 %v918
        %1368 = vmatprep.subr.bf16.mxu0 %v949
        %1369 = vmatpush2.bf16.msra.mxu0 %v948
        %1370 = vmatprep.subr.bf16.mxu0 %v947
        %1371 = vmatpush2.bf16.msra.mxu0 %v946
        %1372 = vmatprep.subr.bf16.mxu0 %v945
        %1373 = vmatpush2.bf16.msra.mxu0 %v944
        %1374 = vmatprep.subr.bf16.mxu0 %v943
        %1375 = vmatpush2.bf16.msra.mxu0 %v942
        %1376 = vmatprep.subr.bf16.mxu0 %v941
        %1377 = vmatpush2.bf16.msra.mxu0 %v940
        %1378 = vmatprep.subr.bf16.mxu0 %v939
        %1379 = vmatpush2.bf16.msra.mxu0 %v938
        %1380 = vmatprep.subr.bf16.mxu0 %v937
        %1381 = vmatpush2.bf16.msra.mxu0 %v936
        %1382 = vmatprep.subr.bf16.mxu0 %v935
        %1383 = vmatpush2.bf16.msra.mxu0 %v934
        %1384 = vmatprep.mubr.bf16.mxu0 %v645
        %1385 = vmatmul.mubr.bf16.gmra.mxu0 %v644
        %v1386 = vpop.f32.mrf.mxu0
        %v1387 = vadd.f32 %v1346, %v1386
        %v1388 = vpop.f32.mrf.mxu0
        %v1389 = vadd.f32 %v1348, %v1388
        %v1390 = vpop.f32.mrf.mxu0
        %v1391 = vpop.f32.mrf.mxu0
        %1392 = vdwg.mxu0
        %1393 = vmatprep.subr.bf16.mxu0 %v965
        %1394 = vmatpush1.bf16.msra.mxu0 %v964
        %1395 = vmatprep.subr.bf16.mxu0 %v963
        %1396 = vmatpush1.bf16.msra.mxu0 %v962
        %1397 = vmatprep.subr.bf16.mxu0 %v961
        %1398 = vmatpush1.bf16.msra.mxu0 %v960
        %1399 = vmatprep.subr.bf16.mxu0 %v959
        %1400 = vmatpush1.bf16.msra.mxu0 %v958
        %1401 = vmatprep.subr.bf16.mxu0 %v957
        %1402 = vmatpush1.bf16.msra.mxu0 %v956
        %1403 = vmatprep.subr.bf16.mxu0 %v955
        %1404 = vmatpush1.bf16.msra.mxu0 %v954
        %1405 = vmatprep.subr.bf16.mxu0 %v953
        %1406 = vmatpush1.bf16.msra.mxu0 %v952
        %1407 = vmatprep.subr.bf16.mxu0 %v951
        %1408 = vmatpush1.bf16.msra.mxu0 %v950
        %1409 = vmatprep.subr.bf16.mxu0 0
        %1410 = vmatpush2.bf16.msra.mxu0 0
        %1411 = vmatprep.subr.bf16.mxu0 0
        %1412 = vmatpush2.bf16.msra.mxu0 0
        %1413 = vmatprep.subr.bf16.mxu0 0
        %1414 = vmatpush2.bf16.msra.mxu0 0
        %1415 = vmatprep.subr.bf16.mxu0 0
        %1416 = vmatpush2.bf16.msra.mxu0 0
        %1417 = vmatprep.subr.bf16.mxu0 0
        %1418 = vmatpush2.bf16.msra.mxu0 0
        %1419 = vmatprep.subr.bf16.mxu0 0
        %1420 = vmatpush2.bf16.msra.mxu0 0
        %1421 = vmatprep.subr.bf16.mxu0 0
        %1422 = vmatpush2.bf16.msra.mxu0 0
        %1423 = vmatprep.subr.bf16.mxu0 0
        %1424 = vmatpush2.bf16.msra.mxu0 0
        %1425 = vmatprep.mubr.bf16.mxu0 0
        %1426 = vmatmul.mubr.bf16.gmra.mxu0 %v1309
        %v1427 = vpop.f32.mrf.mxu0
        %v1428 = vadd.f32 %v1387, %v1427
        %v1429 = vpop.f32.mrf.mxu0
        %v1430 = vadd.f32 %v1389, %v1429
        %v1431 = vpop.f32.mrf.mxu0
        %v1432 = vpop.f32.mrf.mxu0
        %1433 = vdwg.mxu0
        %1434 = vmatprep.subr.bf16.mxu0 %v901
        %1435 = vmatpush1.bf16.msra.mxu0 %v900
        %1436 = vmatprep.subr.bf16.mxu0 %v899
        %1437 = vmatpush1.bf16.msra.mxu0 %v898
        %1438 = vmatprep.subr.bf16.mxu0 %v897
        %1439 = vmatpush1.bf16.msra.mxu0 %v896
        %1440 = vmatprep.subr.bf16.mxu0 %v895
        %1441 = vmatpush1.bf16.msra.mxu0 %v894
        %1442 = vmatprep.subr.bf16.mxu0 %v893
        %1443 = vmatpush1.bf16.msra.mxu0 %v892
        %1444 = vmatprep.subr.bf16.mxu0 %v891
        %1445 = vmatpush1.bf16.msra.mxu0 %v890
        %1446 = vmatprep.subr.bf16.mxu0 %v889
        %1447 = vmatpush1.bf16.msra.mxu0 %v888
        %1448 = vmatprep.subr.bf16.mxu0 %v887
        %1449 = vmatpush1.bf16.msra.mxu0 %v886
        %1450 = vmatprep.subr.bf16.mxu0 %v917
        %1451 = vmatpush2.bf16.msra.mxu0 %v916
        %1452 = vmatprep.subr.bf16.mxu0 %v915
        %1453 = vmatpush2.bf16.msra.mxu0 %v914
        %1454 = vmatprep.subr.bf16.mxu0 %v913
        %1455 = vmatpush2.bf16.msra.mxu0 %v912
        %1456 = vmatprep.subr.bf16.mxu0 %v911
        %1457 = vmatpush2.bf16.msra.mxu0 %v910
        %1458 = vmatprep.subr.bf16.mxu0 %v909
        %1459 = vmatpush2.bf16.msra.mxu0 %v908
        %1460 = vmatprep.subr.bf16.mxu0 %v907
        %1461 = vmatpush2.bf16.msra.mxu0 %v906
        %1462 = vmatprep.subr.bf16.mxu0 %v905
        %1463 = vmatpush2.bf16.msra.mxu0 %v904
        %1464 = vmatprep.subr.bf16.mxu0 %v903
        %1465 = vmatpush2.bf16.msra.mxu0 %v902
        %1466 = vmatprep.mubr.bf16.mxu0 %v644
        %1467 = vmatmul.mubr.bf16.gmra.mxu0 %v643
        %v1468 = vpop.f32.mrf.mxu0
        %v1469 = vadd.f32 0.0, %v1468
        %v1470 = vpop.f32.mrf.mxu0
        %v1471 = vadd.f32 0.0, %v1470
        %v1472 = vpop.f32.mrf.mxu0
        %v1473 = vpop.f32.mrf.mxu0
        %1474 = vdwg.mxu0
        %1475 = vmatprep.subr.bf16.mxu0 %v933
        %1476 = vmatpush1.bf16.msra.mxu0 %v932
        %1477 = vmatprep.subr.bf16.mxu0 %v931
        %1478 = vmatpush1.bf16.msra.mxu0 %v930
        %1479 = vmatprep.subr.bf16.mxu0 %v929
        %1480 = vmatpush1.bf16.msra.mxu0 %v928
        %1481 = vmatprep.subr.bf16.mxu0 %v927
        %1482 = vmatpush1.bf16.msra.mxu0 %v926
        %1483 = vmatprep.subr.bf16.mxu0 %v925
        %1484 = vmatpush1.bf16.msra.mxu0 %v924
        %1485 = vmatprep.subr.bf16.mxu0 %v923
        %1486 = vmatpush1.bf16.msra.mxu0 %v922
        %1487 = vmatprep.subr.bf16.mxu0 %v921
        %1488 = vmatpush1.bf16.msra.mxu0 %v920
        %1489 = vmatprep.subr.bf16.mxu0 %v919
        %1490 = vmatpush1.bf16.msra.mxu0 %v918
        %1491 = vmatprep.subr.bf16.mxu0 %v949
        %1492 = vmatpush2.bf16.msra.mxu0 %v948
        %1493 = vmatprep.subr.bf16.mxu0 %v947
        %1494 = vmatpush2.bf16.msra.mxu0 %v946
        %1495 = vmatprep.subr.bf16.mxu0 %v945
        %1496 = vmatpush2.bf16.msra.mxu0 %v944
        %1497 = vmatprep.subr.bf16.mxu0 %v943
        %1498 = vmatpush2.bf16.msra.mxu0 %v942
        %1499 = vmatprep.subr.bf16.mxu0 %v941
        %1500 = vmatpush2.bf16.msra.mxu0 %v940
        %1501 = vmatprep.subr.bf16.mxu0 %v939
        %1502 = vmatpush2.bf16.msra.mxu0 %v938
        %1503 = vmatprep.subr.bf16.mxu0 %v937
        %1504 = vmatpush2.bf16.msra.mxu0 %v936
        %1505 = vmatprep.subr.bf16.mxu0 %v935
        %1506 = vmatpush2.bf16.msra.mxu0 %v934
        %1507 = vmatprep.mubr.bf16.mxu0 %v1309
        %1508 = vmatmul.mubr.bf16.gmra.mxu0 %v645
        %v1509 = vpop.f32.mrf.mxu0
        %v1510 = vadd.f32 %v1469, %v1509
        %v1511 = vpop.f32.mrf.mxu0
        %v1512 = vadd.f32 %v1471, %v1511
        %v1513 = vpop.f32.mrf.mxu0
        %v1514 = vpop.f32.mrf.mxu0
        %1515 = vdwg.mxu0
        %1516 = vmatprep.subr.bf16.mxu0 %v965
        %1517 = vmatpush1.bf16.msra.mxu0 %v964
        %1518 = vmatprep.subr.bf16.mxu0 %v963
        %1519 = vmatpush1.bf16.msra.mxu0 %v962
        %1520 = vmatprep.subr.bf16.mxu0 %v961
        %1521 = vmatpush1.bf16.msra.mxu0 %v960
        %1522 = vmatprep.subr.bf16.mxu0 %v959
        %1523 = vmatpush1.bf16.msra.mxu0 %v958
        %1524 = vmatprep.subr.bf16.mxu0 %v957
        %1525 = vmatpush1.bf16.msra.mxu0 %v956
        %1526 = vmatprep.subr.bf16.mxu0 %v955
        %1527 = vmatpush1.bf16.msra.mxu0 %v954
        %1528 = vmatprep.subr.bf16.mxu0 %v953
        %1529 = vmatpush1.bf16.msra.mxu0 %v952
        %1530 = vmatprep.subr.bf16.mxu0 %v951
        %1531 = vmatpush1.bf16.msra.mxu0 %v950
        %1532 = vmatprep.subr.bf16.mxu0 0
        %1533 = vmatpush2.bf16.msra.mxu0 0
        %1534 = vmatprep.subr.bf16.mxu0 0
        %1535 = vmatpush2.bf16.msra.mxu0 0
        %1536 = vmatprep.subr.bf16.mxu0 0
        %1537 = vmatpush2.bf16.msra.mxu0 0
        %1538 = vmatprep.subr.bf16.mxu0 0
        %1539 = vmatpush2.bf16.msra.mxu0 0
        %1540 = vmatprep.subr.bf16.mxu0 0
        %1541 = vmatpush2.bf16.msra.mxu0 0
        %1542 = vmatprep.subr.bf16.mxu0 0
        %1543 = vmatpush2.bf16.msra.mxu0 0
        %1544 = vmatprep.subr.bf16.mxu0 0
        %1545 = vmatpush2.bf16.msra.mxu0 0
        %1546 = vmatprep.subr.bf16.mxu0 0
        %1547 = vmatpush2.bf16.msra.mxu0 0
        %1548 = vmatprep.mubr.bf16.mxu0 0
        %1549 = vmatmul.mubr.bf16.gmra.mxu0 %v1310
        %v1550 = vpop.f32.mrf.mxu0
        %v1551 = vadd.f32 %v1510, %v1550
        %v1552 = vpop.f32.mrf.mxu0
        %v1553 = vadd.f32 %v1512, %v1552
        %v1554 = vpop.f32.mrf.mxu0
        %v1555 = vpop.f32.mrf.mxu0
        %1556 = vdwg.mxu0
        %v1557 = vmax.f32 %v1428, %v1551
        %v1558 = vmax.f32 %v1430, %v1553
        %v1559 = vmax.f32 %v1557, %v1558
        %v1560 = vadd.f32 %v1559, %v1299
        %v1561 = vmax.f32 %v1560, 0.0
        %v1563 = vrot.slane %v1302, 1
        %v1566 = vrot.slane %v1561, 1
        %v1568 = vrot.slane %v1302, 2
        %v1570 = vrot.slane %v1561, 2
        %v1572 = vpack.c.bf16 %v1302, %v1302
        %v1573 = vpack.c.bf16 %v1561, %v1561
        %v1574 = vpack.c.bf16 %v1563, %v1563
        %v1575 = vpack.c.bf16 %v1566, %v1566
        %v1576 = vpack.c.bf16 %v1568, %v1568
        %v1577 = vpack.c.bf16 %v1570, %v1570
        %v1658 = vunpack.c.l.b16 %v509
        %v1659 = vunpack.c.h.b16 %v509
        %v1660 = vunpack.c.l.b16 %v510
        %v1661 = vunpack.c.h.b16 %v510
        %v1662 = vunpack.c.l.b16 %v511
        %v1663 = vunpack.c.h.b16 %v511
        %v1664 = vunpack.c.l.b16 %v512
        %v1665 = vunpack.c.h.b16 %v512
        %v1666 = vunpack.c.l.b16 %v513
        %v1667 = vunpack.c.h.b16 %v513
        %v1668 = vunpack.c.l.b16 %v514
        %v1669 = vunpack.c.h.b16 %v514
        %v1670 = vunpack.c.l.b16 %v515
        %v1671 = vunpack.c.h.b16 %v515
        %v1672 = vunpack.c.l.b16 %v516
        %v1673 = vunpack.c.h.b16 %v516
        %v1674 = vunpack.c.l.b16 %v517
        %v1675 = vunpack.c.h.b16 %v517
        %v1676 = vunpack.c.l.b16 %v518
        %v1677 = vunpack.c.h.b16 %v518
        %v1678 = vunpack.c.l.b16 %v519
        %v1679 = vunpack.c.h.b16 %v519
        %v1680 = vunpack.c.l.b16 %v520
        %v1681 = vunpack.c.h.b16 %v520
        %v1682 = vunpack.c.l.b16 %v521
        %v1683 = vunpack.c.h.b16 %v521
        %v1684 = vunpack.c.l.b16 %v522
        %v1685 = vunpack.c.h.b16 %v522
        %v1686 = vunpack.c.l.b16 %v523
        %v1687 = vunpack.c.h.b16 %v523
        %v1688 = vunpack.c.l.b16 %v524
        %v1689 = vunpack.c.h.b16 %v524
        %v1690 = vunpack.c.l.b16 %v525
        %v1691 = vunpack.c.h.b16 %v525
        %v1692 = vunpack.c.l.b16 %v526
        %v1693 = vunpack.c.h.b16 %v526
        %v1694 = vunpack.c.l.b16 %v527
        %v1695 = vunpack.c.h.b16 %v527
        %v1696 = vunpack.c.l.b16 %v528
        %v1697 = vunpack.c.h.b16 %v528
        %v1698 = vunpack.c.l.b16 %v529
        %v1699 = vunpack.c.h.b16 %v529
        %v1700 = vunpack.c.l.b16 %v530
        %v1701 = vunpack.c.h.b16 %v530
        %v1702 = vunpack.c.l.b16 %v531
        %v1703 = vunpack.c.h.b16 %v531
        %v1704 = vunpack.c.l.b16 %v532
        %v1705 = vunpack.c.h.b16 %v532
        %v1706 = vunpack.c.l.b16 %v533
        %v1707 = vunpack.c.h.b16 %v533
        %v1708 = vunpack.c.l.b16 %v534
        %v1709 = vunpack.c.h.b16 %v534
        %v1710 = vunpack.c.l.b16 %v535
        %v1711 = vunpack.c.h.b16 %v535
        %v1712 = vunpack.c.l.b16 %v536
        %v1713 = vunpack.c.h.b16 %v536
        %v1714 = vunpack.c.l.b16 %v537
        %v1715 = vunpack.c.h.b16 %v537
        %v1716 = vunpack.c.l.b16 %v538
        %v1717 = vunpack.c.h.b16 %v538
        %v1718 = vunpack.c.l.b16 %v539
        %v1719 = vunpack.c.h.b16 %v539
        %v1720 = vunpack.c.l.b16 %v540
        %v1721 = vunpack.c.h.b16 %v540
        %v1722 = vunpack.c.l.b16 %v541
        %v1723 = vunpack.c.h.b16 %v541
        %v1724 = vunpack.c.l.b16 %v542
        %v1725 = vunpack.c.h.b16 %v542
        %v1726 = vunpack.c.l.b16 %v543
        %v1727 = vunpack.c.h.b16 %v543
        %v1728 = vunpack.c.l.b16 %v544
        %v1729 = vunpack.c.h.b16 %v544
        %v1730 = vunpack.c.l.b16 %v545
        %v1731 = vunpack.c.h.b16 %v545
        %v1732 = vunpack.c.l.b16 %v546
        %v1733 = vunpack.c.h.b16 %v546
        %v1734 = vunpack.c.l.b16 %v547
        %v1735 = vunpack.c.h.b16 %v547
        %v1736 = vunpack.c.l.b16 %v548
        %v1737 = vunpack.c.h.b16 %v548
        %v1738 = vunpack.c.l.b16 %v549
        %v1739 = vunpack.c.h.b16 %v549
        %v1740 = vunpack.c.l.b16 %v550
        %v1741 = vunpack.c.h.b16 %v550
        %v1742 = vunpack.c.l.b16 %v551
        %v1743 = vunpack.c.h.b16 %v551
        %v1744 = vunpack.c.l.b16 %v552
        %v1745 = vunpack.c.h.b16 %v552
        %v1746 = vunpack.c.l.b16 %v553
        %v1747 = vunpack.c.h.b16 %v553
        %v1748 = vunpack.c.l.b16 %v554
        %v1749 = vunpack.c.h.b16 %v554
        %v1750 = vunpack.c.l.b16 %v555
        %v1751 = vunpack.c.h.b16 %v555
        %v1752 = vunpack.c.l.b16 %v556
        %v1753 = vunpack.c.h.b16 %v556
        %v1754 = vunpack.c.l.b16 %v557
        %v1755 = vunpack.c.h.b16 %v557
        %v1756 = vunpack.c.l.b16 %v558
        %v1757 = vunpack.c.h.b16 %v558
        %v1758 = vunpack.c.l.b16 %v559
        %v1759 = vunpack.c.h.b16 %v559
        %v1760 = vunpack.c.l.b16 %v560
        %v1761 = vunpack.c.h.b16 %v560
        %v1762 = vunpack.c.l.b16 %v561
        %v1763 = vunpack.c.h.b16 %v561
        %v1764 = vunpack.c.l.b16 %v562
        %v1765 = vunpack.c.h.b16 %v562
        %v1766 = vunpack.c.l.b16 %v563
        %v1767 = vunpack.c.h.b16 %v563
        %v1768 = vunpack.c.l.b16 %v564
        %v1769 = vunpack.c.h.b16 %v564
        %v1770 = vunpack.c.l.b16 %v565
        %v1771 = vunpack.c.h.b16 %v565
        %v1772 = vunpack.c.l.b16 %v566
        %v1773 = vunpack.c.h.b16 %v566
        %v1774 = vunpack.c.l.b16 %v567
        %v1775 = vunpack.c.h.b16 %v567
        %v1776 = vunpack.c.l.b16 %v568
        %v1777 = vunpack.c.h.b16 %v568
        %v1778 = vunpack.c.l.b16 %v569
        %v1779 = vunpack.c.h.b16 %v569
        %v1780 = vunpack.c.l.b16 %v570
        %v1781 = vunpack.c.h.b16 %v570
        %v1782 = vunpack.c.l.b16 %v571
        %v1783 = vunpack.c.h.b16 %v571
        %v1784 = vunpack.c.l.b16 %v572
        %v1785 = vunpack.c.h.b16 %v572
        %v1786 = vunpack.c.l.b16 %v573
        %v1787 = vunpack.c.h.b16 %v573
        %v1788 = vunpack.c.l.b16 %v574
        %v1789 = vunpack.c.h.b16 %v574
        %v1790 = vunpack.c.l.b16 %v575
        %v1791 = vunpack.c.h.b16 %v575
        %v1792 = vunpack.c.l.b16 %v576
        %v1793 = vunpack.c.h.b16 %v576
        %v1794 = vunpack.c.l.b16 %v577
        %v1795 = vunpack.c.h.b16 %v577
        %v1796 = vunpack.c.l.b16 %v578
        %v1797 = vunpack.c.h.b16 %v578
        %v1798 = vunpack.c.l.b16 %v579
        %v1799 = vunpack.c.h.b16 %v579
        %v1800 = vunpack.c.l.b16 %v580
        %v1801 = vunpack.c.h.b16 %v580
        %v1802 = vunpack.c.l.b16 %v581
        %v1803 = vunpack.c.h.b16 %v581
        %v1804 = vunpack.c.l.b16 %v582
        %v1805 = vunpack.c.h.b16 %v582
        %v1806 = vunpack.c.l.b16 %v583
        %v1807 = vunpack.c.h.b16 %v583
        %v1808 = vunpack.c.l.b16 %v584
        %v1809 = vunpack.c.h.b16 %v584
        %v1810 = vunpack.c.l.b16 %v585
        %v1811 = vunpack.c.h.b16 %v585
        %v1812 = vunpack.c.l.b16 %v586
        %v1813 = vunpack.c.h.b16 %v586
        %v1814 = vunpack.c.l.b16 %v587
        %v1815 = vunpack.c.h.b16 %v587
        %v1816 = vunpack.c.l.b16 %v588
        %v1817 = vunpack.c.h.b16 %v588
        %v1818 = vpack.c.b16 %v1660, %v1658
        %v1819 = vpack.c.b16 %v1661, %v1659
        %v1820 = vpack.c.b16 %v1664, %v1662
        %v1821 = vpack.c.b16 %v1665, %v1663
        %v1822 = vpack.c.b16 %v1668, %v1666
        %v1823 = vpack.c.b16 %v1669, %v1667
        %v1824 = vpack.c.b16 %v1672, %v1670
        %v1825 = vpack.c.b16 %v1673, %v1671
        %v1826 = vpack.c.b16 %v1676, %v1674
        %v1827 = vpack.c.b16 %v1677, %v1675
        %v1828 = vpack.c.b16 %v1680, %v1678
        %v1829 = vpack.c.b16 %v1681, %v1679
        %v1830 = vpack.c.b16 %v1684, %v1682
        %v1831 = vpack.c.b16 %v1685, %v1683
        %v1832 = vpack.c.b16 %v1688, %v1686
        %v1833 = vpack.c.b16 %v1689, %v1687
        %v1834 = vpack.c.b16 %v1692, %v1690
        %v1835 = vpack.c.b16 %v1693, %v1691
        %v1836 = vpack.c.b16 %v1696, %v1694
        %v1837 = vpack.c.b16 %v1697, %v1695
        %v1838 = vpack.c.b16 %v1700, %v1698
        %v1839 = vpack.c.b16 %v1701, %v1699
        %v1840 = vpack.c.b16 %v1704, %v1702
        %v1841 = vpack.c.b16 %v1705, %v1703
        %v1842 = vpack.c.b16 %v1708, %v1706
        %v1843 = vpack.c.b16 %v1709, %v1707
        %v1844 = vpack.c.b16 %v1712, %v1710
        %v1845 = vpack.c.b16 %v1713, %v1711
        %v1846 = vpack.c.b16 %v1716, %v1714
        %v1847 = vpack.c.b16 %v1717, %v1715
        %v1848 = vpack.c.b16 %v1720, %v1718
        %v1849 = vpack.c.b16 %v1721, %v1719
        %v1850 = vpack.c.b16 %v1724, %v1722
        %v1851 = vpack.c.b16 %v1725, %v1723
        %v1852 = vpack.c.b16 %v1728, %v1726
        %v1853 = vpack.c.b16 %v1729, %v1727
        %v1854 = vpack.c.b16 %v1732, %v1730
        %v1855 = vpack.c.b16 %v1733, %v1731
        %v1856 = vpack.c.b16 %v1736, %v1734
        %v1857 = vpack.c.b16 %v1737, %v1735
        %v1858 = vpack.c.b16 %v1740, %v1738
        %v1859 = vpack.c.b16 %v1741, %v1739
        %v1860 = vpack.c.b16 %v1744, %v1742
        %v1861 = vpack.c.b16 %v1745, %v1743
        %v1862 = vpack.c.b16 %v1748, %v1746
        %v1863 = vpack.c.b16 %v1749, %v1747
        %v1864 = vpack.c.b16 %v1752, %v1750
        %v1865 = vpack.c.b16 %v1753, %v1751
        %v1866 = vpack.c.b16 %v1756, %v1754
        %v1867 = vpack.c.b16 %v1757, %v1755
        %v1868 = vpack.c.b16 %v1760, %v1758
        %v1869 = vpack.c.b16 %v1761, %v1759
        %v1870 = vpack.c.b16 %v1764, %v1762
        %v1871 = vpack.c.b16 %v1765, %v1763
        %v1872 = vpack.c.b16 %v1768, %v1766
        %v1873 = vpack.c.b16 %v1769, %v1767
        %v1874 = vpack.c.b16 %v1772, %v1770
        %v1875 = vpack.c.b16 %v1773, %v1771
        %v1876 = vpack.c.b16 %v1776, %v1774
        %v1877 = vpack.c.b16 %v1777, %v1775
        %v1878 = vpack.c.b16 %v1780, %v1778
        %v1879 = vpack.c.b16 %v1781, %v1779
        %v1880 = vpack.c.b16 %v1784, %v1782
        %v1881 = vpack.c.b16 %v1785, %v1783
        %v1882 = vpack.c.b16 %v1788, %v1786
        %v1883 = vpack.c.b16 %v1789, %v1787
        %v1884 = vpack.c.b16 %v1792, %v1790
        %v1885 = vpack.c.b16 %v1793, %v1791
        %v1886 = vpack.c.b16 %v1796, %v1794
        %v1887 = vpack.c.b16 %v1797, %v1795
        %v1888 = vpack.c.b16 %v1800, %v1798
        %v1889 = vpack.c.b16 %v1801, %v1799
        %v1890 = vpack.c.b16 %v1804, %v1802
        %v1891 = vpack.c.b16 %v1805, %v1803
        %v1892 = vpack.c.b16 %v1808, %v1806
        %v1893 = vpack.c.b16 %v1809, %v1807
        %v1894 = vpack.c.b16 %v1812, %v1810
        %v1895 = vpack.c.b16 %v1813, %v1811
        %v1896 = vpack.c.b16 %v1816, %v1814
        %v1897 = vpack.c.b16 %v1817, %v1815
        %1978 = vmatprep.subr.bf16.mxu0 %v1833
        %1979 = vmatpush1.bf16.msra.mxu0 %v1832
        %1980 = vmatprep.subr.bf16.mxu0 %v1831
        %1981 = vmatpush1.bf16.msra.mxu0 %v1830
        %1982 = vmatprep.subr.bf16.mxu0 %v1829
        %1983 = vmatpush1.bf16.msra.mxu0 %v1828
        %1984 = vmatprep.subr.bf16.mxu0 %v1827
        %1985 = vmatpush1.bf16.msra.mxu0 %v1826
        %1986 = vmatprep.subr.bf16.mxu0 %v1825
        %1987 = vmatpush1.bf16.msra.mxu0 %v1824
        %1988 = vmatprep.subr.bf16.mxu0 %v1823
        %1989 = vmatpush1.bf16.msra.mxu0 %v1822
        %1990 = vmatprep.subr.bf16.mxu0 %v1821
        %1991 = vmatpush1.bf16.msra.mxu0 %v1820
        %1992 = vmatprep.subr.bf16.mxu0 %v1819
        %1993 = vmatpush1.bf16.msra.mxu0 %v1818
        %1994 = vmatprep.subr.bf16.mxu0 %v1849
        %1995 = vmatpush2.bf16.msra.mxu0 %v1848
        %1996 = vmatprep.subr.bf16.mxu0 %v1847
        %1997 = vmatpush2.bf16.msra.mxu0 %v1846
        %1998 = vmatprep.subr.bf16.mxu0 %v1845
        %1999 = vmatpush2.bf16.msra.mxu0 %v1844
        %2000 = vmatprep.subr.bf16.mxu0 %v1843
        %2001 = vmatpush2.bf16.msra.mxu0 %v1842
        %2002 = vmatprep.subr.bf16.mxu0 %v1841
        %2003 = vmatpush2.bf16.msra.mxu0 %v1840
        %2004 = vmatprep.subr.bf16.mxu0 %v1839
        %2005 = vmatpush2.bf16.msra.mxu0 %v1838
        %2006 = vmatprep.subr.bf16.mxu0 %v1837
        %2007 = vmatpush2.bf16.msra.mxu0 %v1836
        %2008 = vmatprep.subr.bf16.mxu0 %v1835
        %2009 = vmatpush2.bf16.msra.mxu0 %v1834
        %2010 = vmatprep.mubr.bf16.mxu0 %v1573
        %2011 = vmatmul.mubr.bf16.gmra.mxu0 %v1572
        %v2012 = vpop.f32.mrf.mxu0
        %v2013 = vadd.f32 0.0, %v2012
        %v2014 = vpop.f32.mrf.mxu0
        %v2015 = vadd.f32 0.0, %v2014
        %v2016 = vpop.f32.mrf.mxu0
        %v2017 = vpop.f32.mrf.mxu0
        %2018 = vdwg.mxu0
        %2019 = vmatprep.subr.bf16.mxu0 %v1865
        %2020 = vmatpush1.bf16.msra.mxu0 %v1864
        %2021 = vmatprep.subr.bf16.mxu0 %v1863
        %2022 = vmatpush1.bf16.msra.mxu0 %v1862
        %2023 = vmatprep.subr.bf16.mxu0 %v1861
        %2024 = vmatpush1.bf16.msra.mxu0 %v1860
        %2025 = vmatprep.subr.bf16.mxu0 %v1859
        %2026 = vmatpush1.bf16.msra.mxu0 %v1858
        %2027 = vmatprep.subr.bf16.mxu0 %v1857
        %2028 = vmatpush1.bf16.msra.mxu0 %v1856
        %2029 = vmatprep.subr.bf16.mxu0 %v1855
        %2030 = vmatpush1.bf16.msra.mxu0 %v1854
        %2031 = vmatprep.subr.bf16.mxu0 %v1853
        %2032 = vmatpush1.bf16.msra.mxu0 %v1852
        %2033 = vmatprep.subr.bf16.mxu0 %v1851
        %2034 = vmatpush1.bf16.msra.mxu0 %v1850
        %2035 = vmatprep.subr.bf16.mxu0 %v1881
        %2036 = vmatpush2.bf16.msra.mxu0 %v1880
        %2037 = vmatprep.subr.bf16.mxu0 %v1879
        %2038 = vmatpush2.bf16.msra.mxu0 %v1878
        %2039 = vmatprep.subr.bf16.mxu0 %v1877
        %2040 = vmatpush2.bf16.msra.mxu0 %v1876
        %2041 = vmatprep.subr.bf16.mxu0 %v1875
        %2042 = vmatpush2.bf16.msra.mxu0 %v1874
        %2043 = vmatprep.subr.bf16.mxu0 %v1873
        %2044 = vmatpush2.bf16.msra.mxu0 %v1872
        %2045 = vmatprep.subr.bf16.mxu0 %v1871
        %2046 = vmatpush2.bf16.msra.mxu0 %v1870
        %2047 = vmatprep.subr.bf16.mxu0 %v1869
        %2048 = vmatpush2.bf16.msra.mxu0 %v1868
        %2049 = vmatprep.subr.bf16.mxu0 %v1867
        %2050 = vmatpush2.bf16.msra.mxu0 %v1866
        %2051 = vmatprep.mubr.bf16.mxu0 %v1575
        %2052 = vmatmul.mubr.bf16.gmra.mxu0 %v1574
        %v2053 = vpop.f32.mrf.mxu0
        %v2054 = vadd.f32 %v2013, %v2053
        %v2055 = vpop.f32.mrf.mxu0
        %v2056 = vadd.f32 %v2015, %v2055
        %v2057 = vpop.f32.mrf.mxu0
        %v2058 = vpop.f32.mrf.mxu0
        %2059 = vdwg.mxu0
        %2060 = vmatprep.subr.bf16.mxu0 %v1897
        %2061 = vmatpush1.bf16.msra.mxu0 %v1896
        %2062 = vmatprep.subr.bf16.mxu0 %v1895
        %2063 = vmatpush1.bf16.msra.mxu0 %v1894
        %2064 = vmatprep.subr.bf16.mxu0 %v1893
        %2065 = vmatpush1.bf16.msra.mxu0 %v1892
        %2066 = vmatprep.subr.bf16.mxu0 %v1891
        %2067 = vmatpush1.bf16.msra.mxu0 %v1890
        %2068 = vmatprep.subr.bf16.mxu0 %v1889
        %2069 = vmatpush1.bf16.msra.mxu0 %v1888
        %2070 = vmatprep.subr.bf16.mxu0 %v1887
        %2071 = vmatpush1.bf16.msra.mxu0 %v1886
        %2072 = vmatprep.subr.bf16.mxu0 %v1885
        %2073 = vmatpush1.bf16.msra.mxu0 %v1884
        %2074 = vmatprep.subr.bf16.mxu0 %v1883
        %2075 = vmatpush1.bf16.msra.mxu0 %v1882
        %2076 = vmatprep.subr.bf16.mxu0 0
        %2077 = vmatpush2.bf16.msra.mxu0 0
        %2078 = vmatprep.subr.bf16.mxu0 0
        %2079 = vmatpush2.bf16.msra.mxu0 0
        %2080 = vmatprep.subr.bf16.mxu0 0
        %2081 = vmatpush2.bf16.msra.mxu0 0
        %2082 = vmatprep.subr.bf16.mxu0 0
        %2083 = vmatpush2.bf16.msra.mxu0 0
        %2084 = vmatprep.subr.bf16.mxu0 0
        %2085 = vmatpush2.bf16.msra.mxu0 0
        %2086 = vmatprep.subr.bf16.mxu0 0
        %2087 = vmatpush2.bf16.msra.mxu0 0
        %2088 = vmatprep.subr.bf16.mxu0 0
        %2089 = vmatpush2.bf16.msra.mxu0 0
        %2090 = vmatprep.subr.bf16.mxu0 0
        %2091 = vmatpush2.bf16.msra.mxu0 0
        %2092 = vmatprep.mubr.bf16.mxu0 0
        %2093 = vmatmul.mubr.bf16.gmra.mxu0 %v1576
        %v2094 = vpop.f32.mrf.mxu0
        %v2095 = vadd.f32 %v2054, %v2094
        %v2096 = vpop.f32.mrf.mxu0
        %v2097 = vadd.f32 %v2056, %v2096
        %v2098 = vpop.f32.mrf.mxu0
        %v2099 = vpop.f32.mrf.mxu0
        %2100 = vdwg.mxu0
        %2101 = vmatprep.subr.bf16.mxu0 %v1833
        %2102 = vmatpush1.bf16.msra.mxu0 %v1832
        %2103 = vmatprep.subr.bf16.mxu0 %v1831
        %2104 = vmatpush1.bf16.msra.mxu0 %v1830
        %2105 = vmatprep.subr.bf16.mxu0 %v1829
        %2106 = vmatpush1.bf16.msra.mxu0 %v1828
        %2107 = vmatprep.subr.bf16.mxu0 %v1827
        %2108 = vmatpush1.bf16.msra.mxu0 %v1826
        %2109 = vmatprep.subr.bf16.mxu0 %v1825
        %2110 = vmatpush1.bf16.msra.mxu0 %v1824
        %2111 = vmatprep.subr.bf16.mxu0 %v1823
        %2112 = vmatpush1.bf16.msra.mxu0 %v1822
        %2113 = vmatprep.subr.bf16.mxu0 %v1821
        %2114 = vmatpush1.bf16.msra.mxu0 %v1820
        %2115 = vmatprep.subr.bf16.mxu0 %v1819
        %2116 = vmatpush1.bf16.msra.mxu0 %v1818
        %2117 = vmatprep.subr.bf16.mxu0 %v1849
        %2118 = vmatpush2.bf16.msra.mxu0 %v1848
        %2119 = vmatprep.subr.bf16.mxu0 %v1847
        %2120 = vmatpush2.bf16.msra.mxu0 %v1846
        %2121 = vmatprep.subr.bf16.mxu0 %v1845
        %2122 = vmatpush2.bf16.msra.mxu0 %v1844
        %2123 = vmatprep.subr.bf16.mxu0 %v1843
        %2124 = vmatpush2.bf16.msra.mxu0 %v1842
        %2125 = vmatprep.subr.bf16.mxu0 %v1841
        %2126 = vmatpush2.bf16.msra.mxu0 %v1840
        %2127 = vmatprep.subr.bf16.mxu0 %v1839
        %2128 = vmatpush2.bf16.msra.mxu0 %v1838
        %2129 = vmatprep.subr.bf16.mxu0 %v1837
        %2130 = vmatpush2.bf16.msra.mxu0 %v1836
        %2131 = vmatprep.subr.bf16.mxu0 %v1835
        %2132 = vmatpush2.bf16.msra.mxu0 %v1834
        %2133 = vmatprep.mubr.bf16.mxu0 %v1574
        %2134 = vmatmul.mubr.bf16.gmra.mxu0 %v1573
        %v2135 = vpop.f32.mrf.mxu0
        %v2136 = vadd.f32 0.0, %v2135
        %v2137 = vpop.f32.mrf.mxu0
        %v2138 = vadd.f32 0.0, %v2137
        %v2139 = vpop.f32.mrf.mxu0
        %v2140 = vpop.f32.mrf.mxu0
        %2141 = vdwg.mxu0
        %2142 = vmatprep.subr.bf16.mxu0 %v1865
        %2143 = vmatpush1.bf16.msra.mxu0 %v1864
        %2144 = vmatprep.subr.bf16.mxu0 %v1863
        %2145 = vmatpush1.bf16.msra.mxu0 %v1862
        %2146 = vmatprep.subr.bf16.mxu0 %v1861
        %2147 = vmatpush1.bf16.msra.mxu0 %v1860
        %2148 = vmatprep.subr.bf16.mxu0 %v1859
        %2149 = vmatpush1.bf16.msra.mxu0 %v1858
        %2150 = vmatprep.subr.bf16.mxu0 %v1857
        %2151 = vmatpush1.bf16.msra.mxu0 %v1856
        %2152 = vmatprep.subr.bf16.mxu0 %v1855
        %2153 = vmatpush1.bf16.msra.mxu0 %v1854
        %2154 = vmatprep.subr.bf16.mxu0 %v1853
        %2155 = vmatpush1.bf16.msra.mxu0 %v1852
        %2156 = vmatprep.subr.bf16.mxu0 %v1851
        %2157 = vmatpush1.bf16.msra.mxu0 %v1850
        %2158 = vmatprep.subr.bf16.mxu0 %v1881
        %2159 = vmatpush2.bf16.msra.mxu0 %v1880
        %2160 = vmatprep.subr.bf16.mxu0 %v1879
        %2161 = vmatpush2.bf16.msra.mxu0 %v1878
        %2162 = vmatprep.subr.bf16.mxu0 %v1877
        %2163 = vmatpush2.bf16.msra.mxu0 %v1876
        %2164 = vmatprep.subr.bf16.mxu0 %v1875
        %2165 = vmatpush2.bf16.msra.mxu0 %v1874
        %2166 = vmatprep.subr.bf16.mxu0 %v1873
        %2167 = vmatpush2.bf16.msra.mxu0 %v1872
        %2168 = vmatprep.subr.bf16.mxu0 %v1871
        %2169 = vmatpush2.bf16.msra.mxu0 %v1870
        %2170 = vmatprep.subr.bf16.mxu0 %v1869
        %2171 = vmatpush2.bf16.msra.mxu0 %v1868
        %2172 = vmatprep.subr.bf16.mxu0 %v1867
        %2173 = vmatpush2.bf16.msra.mxu0 %v1866
        %2174 = vmatprep.mubr.bf16.mxu0 %v1576
        %2175 = vmatmul.mubr.bf16.gmra.mxu0 %v1575
        %v2176 = vpop.f32.mrf.mxu0
        %v2177 = vadd.f32 %v2136, %v2176
        %v2178 = vpop.f32.mrf.mxu0
        %v2179 = vadd.f32 %v2138, %v2178
        %v2180 = vpop.f32.mrf.mxu0
        %v2181 = vpop.f32.mrf.mxu0
        %2182 = vdwg.mxu0
        %2183 = vmatprep.subr.bf16.mxu0 %v1897
        %2184 = vmatpush1.bf16.msra.mxu0 %v1896
        %2185 = vmatprep.subr.bf16.mxu0 %v1895
        %2186 = vmatpush1.bf16.msra.mxu0 %v1894
        %2187 = vmatprep.subr.bf16.mxu0 %v1893
        %2188 = vmatpush1.bf16.msra.mxu0 %v1892
        %2189 = vmatprep.subr.bf16.mxu0 %v1891
        %2190 = vmatpush1.bf16.msra.mxu0 %v1890
        %2191 = vmatprep.subr.bf16.mxu0 %v1889
        %2192 = vmatpush1.bf16.msra.mxu0 %v1888
        %2193 = vmatprep.subr.bf16.mxu0 %v1887
        %2194 = vmatpush1.bf16.msra.mxu0 %v1886
        %2195 = vmatprep.subr.bf16.mxu0 %v1885
        %2196 = vmatpush1.bf16.msra.mxu0 %v1884
        %2197 = vmatprep.subr.bf16.mxu0 %v1883
        %2198 = vmatpush1.bf16.msra.mxu0 %v1882
        %2199 = vmatprep.subr.bf16.mxu0 0
        %2200 = vmatpush2.bf16.msra.mxu0 0
        %2201 = vmatprep.subr.bf16.mxu0 0
        %2202 = vmatpush2.bf16.msra.mxu0 0
        %2203 = vmatprep.subr.bf16.mxu0 0
        %2204 = vmatpush2.bf16.msra.mxu0 0
        %2205 = vmatprep.subr.bf16.mxu0 0
        %2206 = vmatpush2.bf16.msra.mxu0 0
        %2207 = vmatprep.subr.bf16.mxu0 0
        %2208 = vmatpush2.bf16.msra.mxu0 0
        %2209 = vmatprep.subr.bf16.mxu0 0
        %2210 = vmatpush2.bf16.msra.mxu0 0
        %2211 = vmatprep.subr.bf16.mxu0 0
        %2212 = vmatpush2.bf16.msra.mxu0 0
        %2213 = vmatprep.subr.bf16.mxu0 0
        %2214 = vmatpush2.bf16.msra.mxu0 0
        %2215 = vmatprep.mubr.bf16.mxu0 0
        %2216 = vmatmul.mubr.bf16.gmra.mxu0 %v1577
        %v2217 = vpop.f32.mrf.mxu0
        %v2218 = vadd.f32 %v2177, %v2217
        %v2219 = vpop.f32.mrf.mxu0
        %v2220 = vadd.f32 %v2179, %v2219
        %v2221 = vpop.f32.mrf.mxu0
        %v2222 = vpop.f32.mrf.mxu0
        %2223 = vdwg.mxu0
        %v2224 = vmax.f32 %v2095, %v2218
        %v2225 = vmax.f32 %v2097, %v2220
        %v2226 = vmax.f32 %v2224, %v2225
        %v2228 = vlaneseq
        %v2229 = vshrl.u32 %v2228, 7
        %v2230 = vsub.s32 0, %v2229
        %v2231 = vrot.slane %v622, %v2230
        %v2233 = vadd.f32 %v2226, %v2231
        %v2234 = vmax.f32 %v2233, 0.0
        %v2235 = vpack.c.bf16 %v2234, %v2234
        %v2236 = vld [vmem:[#allocation5] sm:$0xf]
        %v2237 = vld [vmem:[#allocation5 + $0x4] sm:$0xf]
        %v2238 = vld [vmem:[#allocation5 + $0x8] sm:$0xf]
        %v2239 = vld [vmem:[#allocation5 + $0xc] sm:$0xf]
        %v2240 = vld [vmem:[#allocation5 + $0x10] sm:$0xf]
        %v2241 = vld [vmem:[#allocation5 + $0x14] sm:$0xf]
        %v2242 = vld [vmem:[#allocation5 + $0x18] sm:$0xf]
        %v2243 = vld [vmem:[#allocation5 + $0x1c] sm:$0xf]
        %v2244 = vld [vmem:[#allocation5 + $0x20] sm:$0xf]
        %v2245 = vld [vmem:[#allocation5 + $0x24] sm:$0xf]
        %v2246 = vld [vmem:[#allocation5 + $0x28] sm:$0xf]
        %v2247 = vld [vmem:[#allocation5 + $0x2c] sm:$0xf]
        %v2248 = vld [vmem:[#allocation5 + $0x30] sm:$0xf]
        %v2249 = vld [vmem:[#allocation5 + $0x34] sm:$0xf]
        %v2250 = vld [vmem:[#allocation5 + $0x38] sm:$0xf]
        %v2251 = vld [vmem:[#allocation5 + $0x3c] sm:$0xf]
        %v2268 = vunpack.c.l.b16 %v2236
        %v2269 = vunpack.c.l.b16 %v2237
        %v2270 = vunpack.c.l.b16 %v2238
        %v2271 = vunpack.c.l.b16 %v2239
        %v2272 = vunpack.c.l.b16 %v2240
        %v2273 = vunpack.c.l.b16 %v2241
        %v2274 = vunpack.c.l.b16 %v2242
        %v2275 = vunpack.c.l.b16 %v2243
        %v2276 = vunpack.c.l.b16 %v2244
        %v2277 = vunpack.c.l.b16 %v2245
        %v2278 = vunpack.c.l.b16 %v2246
        %v2279 = vunpack.c.l.b16 %v2247
        %v2280 = vunpack.c.l.b16 %v2248
        %v2281 = vunpack.c.l.b16 %v2249
        %v2282 = vunpack.c.l.b16 %v2250
        %v2283 = vunpack.c.l.b16 %v2251
        %v2284 = vpack.c.b16 %v2269, %v2268
        %v2285 = vpack.c.b16 %v2271, %v2270
        %v2286 = vpack.c.b16 %v2273, %v2272
        %v2287 = vpack.c.b16 %v2275, %v2274
        %v2288 = vpack.c.b16 %v2277, %v2276
        %v2289 = vpack.c.b16 %v2279, %v2278
        %v2290 = vpack.c.b16 %v2281, %v2280
        %v2291 = vpack.c.b16 %v2283, %v2282
        %2300 = vmatprep.subr.bf16.mxu0 0
        %2301 = vmatpush1.bf16.msra.mxu0 %v2291
        %2302 = vmatprep.subr.bf16.mxu0 0
        %2303 = vmatpush1.bf16.msra.mxu0 %v2290
        %2304 = vmatprep.subr.bf16.mxu0 0
        %2305 = vmatpush1.bf16.msra.mxu0 %v2289
        %2306 = vmatprep.subr.bf16.mxu0 0
        %2307 = vmatpush1.bf16.msra.mxu0 %v2288
        %2308 = vmatprep.subr.bf16.mxu0 0
        %2309 = vmatpush1.bf16.msra.mxu0 %v2287
        %2310 = vmatprep.subr.bf16.mxu0 0
        %2311 = vmatpush1.bf16.msra.mxu0 %v2286
        %2312 = vmatprep.subr.bf16.mxu0 0
        %2313 = vmatpush1.bf16.msra.mxu0 %v2285
        %2314 = vmatprep.subr.bf16.mxu0 0
        %2315 = vmatpush1.bf16.msra.mxu0 %v2284
        %2316 = vmatprep.subr.bf16.mxu0 0
        %2317 = vmatpush2.bf16.msra.mxu0 0
        %2318 = vmatprep.subr.bf16.mxu0 0
        %2319 = vmatpush2.bf16.msra.mxu0 0
        %2320 = vmatprep.subr.bf16.mxu0 0
        %2321 = vmatpush2.bf16.msra.mxu0 0
        %2322 = vmatprep.subr.bf16.mxu0 0
        %2323 = vmatpush2.bf16.msra.mxu0 0
        %2324 = vmatprep.subr.bf16.mxu0 0
        %2325 = vmatpush2.bf16.msra.mxu0 0
        %2326 = vmatprep.subr.bf16.mxu0 0
        %2327 = vmatpush2.bf16.msra.mxu0 0
        %2328 = vmatprep.subr.bf16.mxu0 0
        %2329 = vmatpush2.bf16.msra.mxu0 0
        %2330 = vmatprep.subr.bf16.mxu0 0
        %2331 = vmatpush2.bf16.msra.mxu0 0
        %2332 = vmatprep.mubr.bf16.mxu0 0
        %2333 = vmatmul.mubr.bf16.gmra.mxu0 %v2235
        %v2334 = vpop.f32.mrf.mxu0
        %v2335 = vadd.f32 0.0, %v2334
        %v2336 = vpop.f32.mrf.mxu0
        %v2337 = vpop.f32.mrf.mxu0
        %v2338 = vpop.f32.mrf.mxu0
        %2339 = vdwg.mxu0
        %v2340 = vadd.f32 %v623, %v2335
        %s2341 = scalar_lea.vmem [#allocation5], 64
        %v2342 = vld [vmem:[%s2341] sm:$0xf]
        %v2343 = vld [vmem:[%s2341 + $0x4] sm:$0xf]
        %v2344 = vld [vmem:[%s2341 + $0x8] sm:$0xf]
        %v2345 = vld [vmem:[%s2341 + $0xc] sm:$0xf]
        %v2346 = vld [vmem:[%s2341 + $0x10] sm:$0xf]
        %v2347 = vld [vmem:[%s2341 + $0x14] sm:$0xf]
        %v2348 = vld [vmem:[%s2341 + $0x18] sm:$0xf]
        %v2349 = vld [vmem:[%s2341 + $0x1c] sm:$0xf]
        %v2350 = vld [vmem:[%s2341 + $0x20] sm:$0xf]
        %v2351 = vld [vmem:[%s2341 + $0x24] sm:$0xf]
        %v2352 = vld [vmem:[%s2341 + $0x28] sm:$0xf]
        %v2353 = vld [vmem:[%s2341 + $0x2c] sm:$0xf]
        %v2354 = vld [vmem:[%s2341 + $0x30] sm:$0xf]
        %v2355 = vld [vmem:[%s2341 + $0x34] sm:$0xf]
        %v2356 = vld [vmem:[%s2341 + $0x38] sm:$0xf]
        %v2357 = vld [vmem:[%s2341 + $0x3c] sm:$0xf]
        %v2359 = vshrl.u32 %v2235, 16
        %v2378 = vunpack.c.l.b16 %v2342
        %v2379 = vunpack.c.l.b16 %v2343
        %v2380 = vunpack.c.l.b16 %v2344
        %v2381 = vunpack.c.l.b16 %v2345
        %v2382 = vunpack.c.l.b16 %v2346
        %v2383 = vunpack.c.l.b16 %v2347
        %v2384 = vunpack.c.l.b16 %v2348
        %v2385 = vunpack.c.l.b16 %v2349
        %v2386 = vunpack.c.l.b16 %v2350
        %v2387 = vunpack.c.l.b16 %v2351
        %v2388 = vunpack.c.l.b16 %v2352
        %v2389 = vunpack.c.l.b16 %v2353
        %v2390 = vunpack.c.l.b16 %v2354
        %v2391 = vunpack.c.l.b16 %v2355
        %v2392 = vunpack.c.l.b16 %v2356
        %v2393 = vunpack.c.l.b16 %v2357
        %v2394 = vpack.c.b16 %v2379, %v2378
        %v2395 = vpack.c.b16 %v2381, %v2380
        %v2396 = vpack.c.b16 %v2383, %v2382
        %v2397 = vpack.c.b16 %v2385, %v2384
        %v2398 = vpack.c.b16 %v2387, %v2386
        %v2399 = vpack.c.b16 %v2389, %v2388
        %v2400 = vpack.c.b16 %v2391, %v2390
        %v2401 = vpack.c.b16 %v2393, %v2392
        %2410 = vmatprep.subr.bf16.mxu0 0
        %2411 = vmatpush1.bf16.msra.mxu0 %v2401
        %2412 = vmatprep.subr.bf16.mxu0 0
        %2413 = vmatpush1.bf16.msra.mxu0 %v2400
        %2414 = vmatprep.subr.bf16.mxu0 0
        %2415 = vmatpush1.bf16.msra.mxu0 %v2399
        %2416 = vmatprep.subr.bf16.mxu0 0
        %2417 = vmatpush1.bf16.msra.mxu0 %v2398
        %2418 = vmatprep.subr.bf16.mxu0 0
        %2419 = vmatpush1.bf16.msra.mxu0 %v2397
        %2420 = vmatprep.subr.bf16.mxu0 0
        %2421 = vmatpush1.bf16.msra.mxu0 %v2396
        %2422 = vmatprep.subr.bf16.mxu0 0
        %2423 = vmatpush1.bf16.msra.mxu0 %v2395
        %2424 = vmatprep.subr.bf16.mxu0 0
        %2425 = vmatpush1.bf16.msra.mxu0 %v2394
        %2426 = vmatprep.subr.bf16.mxu0 0
        %2427 = vmatpush2.bf16.msra.mxu0 0
        %2428 = vmatprep.subr.bf16.mxu0 0
        %2429 = vmatpush2.bf16.msra.mxu0 0
        %2430 = vmatprep.subr.bf16.mxu0 0
        %2431 = vmatpush2.bf16.msra.mxu0 0
        %2432 = vmatprep.subr.bf16.mxu0 0
        %2433 = vmatpush2.bf16.msra.mxu0 0
        %2434 = vmatprep.subr.bf16.mxu0 0
        %2435 = vmatpush2.bf16.msra.mxu0 0
        %2436 = vmatprep.subr.bf16.mxu0 0
        %2437 = vmatpush2.bf16.msra.mxu0 0
        %2438 = vmatprep.subr.bf16.mxu0 0
        %2439 = vmatpush2.bf16.msra.mxu0 0
        %2440 = vmatprep.subr.bf16.mxu0 0
        %2441 = vmatpush2.bf16.msra.mxu0 0
        %2442 = vmatprep.mubr.bf16.mxu0 0
        %2443 = vmatmul.mubr.bf16.gmra.mxu0 %v2359
        %v2444 = vpop.f32.mrf.mxu0
        %v2445 = vadd.f32 0.0, %v2444
        %v2446 = vpop.f32.mrf.mxu0
        %v2447 = vpop.f32.mrf.mxu0
        %v2448 = vpop.f32.mrf.mxu0
        %2449 = vdwg.mxu0
        %v2450 = vadd.f32 %v2340, %v2445
        %s2451 = scalar_lea.vmem [#allocation5], 128
        %v2452 = vld [vmem:[%s2451] sm:$0xf]
        %v2453 = vld [vmem:[%s2451 + $0x4] sm:$0xf]
        %v2454 = vld [vmem:[%s2451 + $0x8] sm:$0xf]
        %v2455 = vld [vmem:[%s2451 + $0xc] sm:$0xf]
        %v2456 = vld [vmem:[%s2451 + $0x10] sm:$0xf]
        %v2457 = vld [vmem:[%s2451 + $0x14] sm:$0xf]
        %v2458 = vld [vmem:[%s2451 + $0x18] sm:$0xf]
        %v2459 = vld [vmem:[%s2451 + $0x1c] sm:$0xf]
        %v2460 = vld [vmem:[%s2451 + $0x20] sm:$0xf]
        %v2461 = vld [vmem:[%s2451 + $0x24] sm:$0xf]
        %v2462 = vld [vmem:[%s2451 + $0x28] sm:$0xf]
        %v2463 = vld [vmem:[%s2451 + $0x2c] sm:$0xf]
        %v2464 = vld [vmem:[%s2451 + $0x30] sm:$0xf]
        %v2465 = vld [vmem:[%s2451 + $0x34] sm:$0xf]
        %v2466 = vld [vmem:[%s2451 + $0x38] sm:$0xf]
        %v2467 = vld [vmem:[%s2451 + $0x3c] sm:$0xf]
        %v2469 = vrot.slane %v2235, 1
        %v2487 = vunpack.c.l.b16 %v2452
        %v2488 = vunpack.c.l.b16 %v2453
        %v2489 = vunpack.c.l.b16 %v2454
        %v2490 = vunpack.c.l.b16 %v2455
        %v2491 = vunpack.c.l.b16 %v2456
        %v2492 = vunpack.c.l.b16 %v2457
        %v2493 = vunpack.c.l.b16 %v2458
        %v2494 = vunpack.c.l.b16 %v2459
        %v2495 = vunpack.c.l.b16 %v2460
        %v2496 = vunpack.c.l.b16 %v2461
        %v2497 = vunpack.c.l.b16 %v2462
        %v2498 = vunpack.c.l.b16 %v2463
        %v2499 = vunpack.c.l.b16 %v2464
        %v2500 = vunpack.c.l.b16 %v2465
        %v2501 = vunpack.c.l.b16 %v2466
        %v2502 = vunpack.c.l.b16 %v2467
        %v2503 = vpack.c.b16 %v2488, %v2487
        %v2504 = vpack.c.b16 %v2490, %v2489
        %v2505 = vpack.c.b16 %v2492, %v2491
        %v2506 = vpack.c.b16 %v2494, %v2493
        %v2507 = vpack.c.b16 %v2496, %v2495
        %v2508 = vpack.c.b16 %v2498, %v2497
        %v2509 = vpack.c.b16 %v2500, %v2499
        %v2510 = vpack.c.b16 %v2502, %v2501
        %2519 = vmatprep.subr.bf16.mxu0 0
        %2520 = vmatpush1.bf16.msra.mxu0 %v2510
        %2521 = vmatprep.subr.bf16.mxu0 0
        %2522 = vmatpush1.bf16.msra.mxu0 %v2509
        %2523 = vmatprep.subr.bf16.mxu0 0
        %2524 = vmatpush1.bf16.msra.mxu0 %v2508
        %2525 = vmatprep.subr.bf16.mxu0 0
        %2526 = vmatpush1.bf16.msra.mxu0 %v2507
        %2527 = vmatprep.subr.bf16.mxu0 0
        %2528 = vmatpush1.bf16.msra.mxu0 %v2506
        %2529 = vmatprep.subr.bf16.mxu0 0
        %2530 = vmatpush1.bf16.msra.mxu0 %v2505
        %2531 = vmatprep.subr.bf16.mxu0 0
        %2532 = vmatpush1.bf16.msra.mxu0 %v2504
        %2533 = vmatprep.subr.bf16.mxu0 0
        %2534 = vmatpush1.bf16.msra.mxu0 %v2503
        %2535 = vmatprep.subr.bf16.mxu0 0
        %2536 = vmatpush2.bf16.msra.mxu0 0
        %2537 = vmatprep.subr.bf16.mxu0 0
        %2538 = vmatpush2.bf16.msra.mxu0 0
        %2539 = vmatprep.subr.bf16.mxu0 0
        %2540 = vmatpush2.bf16.msra.mxu0 0
        %2541 = vmatprep.subr.bf16.mxu0 0
        %2542 = vmatpush2.bf16.msra.mxu0 0
        %2543 = vmatprep.subr.bf16.mxu0 0
        %2544 = vmatpush2.bf16.msra.mxu0 0
        %2545 = vmatprep.subr.bf16.mxu0 0
        %2546 = vmatpush2.bf16.msra.mxu0 0
        %2547 = vmatprep.subr.bf16.mxu0 0
        %2548 = vmatpush2.bf16.msra.mxu0 0
        %2549 = vmatprep.subr.bf16.mxu0 0
        %2550 = vmatpush2.bf16.msra.mxu0 0
        %2551 = vmatprep.mubr.bf16.mxu0 0
        %2552 = vmatmul.mubr.bf16.gmra.mxu0 %v2469
        %v2553 = vpop.f32.mrf.mxu0
        %v2554 = vadd.f32 0.0, %v2553
        %v2555 = vpop.f32.mrf.mxu0
        %v2556 = vpop.f32.mrf.mxu0
        %v2557 = vpop.f32.mrf.mxu0
        %2558 = vdwg.mxu0
        %v2559 = vadd.f32 %v2450, %v2554
        %s2560 = scalar_lea.vmem [#allocation5], 192
        %v2561 = vld [vmem:[%s2560] sm:$0xf]
        %v2562 = vld [vmem:[%s2560 + $0x4] sm:$0xf]
        %v2563 = vld [vmem:[%s2560 + $0x8] sm:$0xf]
        %v2564 = vld [vmem:[%s2560 + $0xc] sm:$0xf]
        %v2565 = vld [vmem:[%s2560 + $0x10] sm:$0xf]
        %v2566 = vld [vmem:[%s2560 + $0x14] sm:$0xf]
        %v2567 = vld [vmem:[%s2560 + $0x18] sm:$0xf]
        %v2568 = vld [vmem:[%s2560 + $0x1c] sm:$0xf]
        %v2569 = vld [vmem:[%s2560 + $0x20] sm:$0xf]
        %v2570 = vld [vmem:[%s2560 + $0x24] sm:$0xf]
        %v2571 = vld [vmem:[%s2560 + $0x28] sm:$0xf]
        %v2572 = vld [vmem:[%s2560 + $0x2c] sm:$0xf]
        %v2573 = vld [vmem:[%s2560 + $0x30] sm:$0xf]
        %v2574 = vld [vmem:[%s2560 + $0x34] sm:$0xf]
        %v2575 = vld [vmem:[%s2560 + $0x38] sm:$0xf]
        %v2576 = vld [vmem:[%s2560 + $0x3c] sm:$0xf]
        %v2577 = vrot.slane %v2359, 1
        %v2595 = vunpack.c.l.b16 %v2561
        %v2596 = vunpack.c.l.b16 %v2562
        %v2597 = vunpack.c.l.b16 %v2563
        %v2598 = vunpack.c.l.b16 %v2564
        %v2599 = vunpack.c.l.b16 %v2565
        %v2600 = vunpack.c.l.b16 %v2566
        %v2601 = vunpack.c.l.b16 %v2567
        %v2602 = vunpack.c.l.b16 %v2568
        %v2603 = vunpack.c.l.b16 %v2569
        %v2604 = vunpack.c.l.b16 %v2570
        %v2605 = vunpack.c.l.b16 %v2571
        %v2606 = vunpack.c.l.b16 %v2572
        %v2607 = vunpack.c.l.b16 %v2573
        %v2608 = vunpack.c.l.b16 %v2574
        %v2609 = vunpack.c.l.b16 %v2575
        %v2610 = vunpack.c.l.b16 %v2576
        %v2611 = vpack.c.b16 %v2596, %v2595
        %v2612 = vpack.c.b16 %v2598, %v2597
        %v2613 = vpack.c.b16 %v2600, %v2599
        %v2614 = vpack.c.b16 %v2602, %v2601
        %v2615 = vpack.c.b16 %v2604, %v2603
        %v2616 = vpack.c.b16 %v2606, %v2605
        %v2617 = vpack.c.b16 %v2608, %v2607
        %v2618 = vpack.c.b16 %v2610, %v2609
        %2627 = vmatprep.subr.bf16.mxu0 0
        %2628 = vmatpush1.bf16.msra.mxu0 %v2618
        %2629 = vmatprep.subr.bf16.mxu0 0
        %2630 = vmatpush1.bf16.msra.mxu0 %v2617
        %2631 = vmatprep.subr.bf16.mxu0 0
        %2632 = vmatpush1.bf16.msra.mxu0 %v2616
        %2633 = vmatprep.subr.bf16.mxu0 0
        %2634 = vmatpush1.bf16.msra.mxu0 %v2615
        %2635 = vmatprep.subr.bf16.mxu0 0
        %2636 = vmatpush1.bf16.msra.mxu0 %v2614
        %2637 = vmatprep.subr.bf16.mxu0 0
        %2638 = vmatpush1.bf16.msra.mxu0 %v2613
        %2639 = vmatprep.subr.bf16.mxu0 0
        %2640 = vmatpush1.bf16.msra.mxu0 %v2612
        %2641 = vmatprep.subr.bf16.mxu0 0
        %2642 = vmatpush1.bf16.msra.mxu0 %v2611
        %2643 = vmatprep.subr.bf16.mxu0 0
        %2644 = vmatpush2.bf16.msra.mxu0 0
        %2645 = vmatprep.subr.bf16.mxu0 0
        %2646 = vmatpush2.bf16.msra.mxu0 0
        %2647 = vmatprep.subr.bf16.mxu0 0
        %2648 = vmatpush2.bf16.msra.mxu0 0
        %2649 = vmatprep.subr.bf16.mxu0 0
        %2650 = vmatpush2.bf16.msra.mxu0 0
        %2651 = vmatprep.subr.bf16.mxu0 0
        %2652 = vmatpush2.bf16.msra.mxu0 0
        %2653 = vmatprep.subr.bf16.mxu0 0
        %2654 = vmatpush2.bf16.msra.mxu0 0
        %2655 = vmatprep.subr.bf16.mxu0 0
        %2656 = vmatpush2.bf16.msra.mxu0 0
        %2657 = vmatprep.subr.bf16.mxu0 0
        %2658 = vmatpush2.bf16.msra.mxu0 0
        %2659 = vmatprep.mubr.bf16.mxu0 0
        %2660 = vmatmul.mubr.bf16.gmra.mxu0 %v2577
        %v2661 = vpop.f32.mrf.mxu0
        %v2662 = vadd.f32 0.0, %v2661
        %v2663 = vpop.f32.mrf.mxu0
        %v2664 = vpop.f32.mrf.mxu0
        %v2665 = vpop.f32.mrf.mxu0
        %2666 = vdwg.mxu0
        %v2667 = vadd.f32 %v2559, %v2662
        %s2668 = scalar_lea.vmem [#allocation5], 256
        %v2669 = vld [vmem:[%s2668] sm:$0xf]
        %v2670 = vld [vmem:[%s2668 + $0x4] sm:$0xf]
        %v2671 = vld [vmem:[%s2668 + $0x8] sm:$0xf]
        %v2672 = vld [vmem:[%s2668 + $0xc] sm:$0xf]
        %v2673 = vld [vmem:[%s2668 + $0x10] sm:$0xf]
        %v2674 = vld [vmem:[%s2668 + $0x14] sm:$0xf]
        %v2675 = vld [vmem:[%s2668 + $0x18] sm:$0xf]
        %v2676 = vld [vmem:[%s2668 + $0x1c] sm:$0xf]
        %v2677 = vld [vmem:[%s2668 + $0x20] sm:$0xf]
        %v2678 = vld [vmem:[%s2668 + $0x24] sm:$0xf]
        %v2679 = vld [vmem:[%s2668 + $0x28] sm:$0xf]
        %v2680 = vld [vmem:[%s2668 + $0x2c] sm:$0xf]
        %v2681 = vld [vmem:[%s2668 + $0x30] sm:$0xf]
        %v2682 = vld [vmem:[%s2668 + $0x34] sm:$0xf]
        %v2683 = vld [vmem:[%s2668 + $0x38] sm:$0xf]
        %v2684 = vld [vmem:[%s2668 + $0x3c] sm:$0xf]
        %v2685 = vrot.slane %v2235, 2
        %v2703 = vunpack.c.l.b16 %v2669
        %v2704 = vunpack.c.l.b16 %v2670
        %v2705 = vunpack.c.l.b16 %v2671
        %v2706 = vunpack.c.l.b16 %v2672
        %v2707 = vunpack.c.l.b16 %v2673
        %v2708 = vunpack.c.l.b16 %v2674
        %v2709 = vunpack.c.l.b16 %v2675
        %v2710 = vunpack.c.l.b16 %v2676
        %v2711 = vunpack.c.l.b16 %v2677
        %v2712 = vunpack.c.l.b16 %v2678
        %v2713 = vunpack.c.l.b16 %v2679
        %v2714 = vunpack.c.l.b16 %v2680
        %v2715 = vunpack.c.l.b16 %v2681
        %v2716 = vunpack.c.l.b16 %v2682
        %v2717 = vunpack.c.l.b16 %v2683
        %v2718 = vunpack.c.l.b16 %v2684
        %v2719 = vpack.c.b16 %v2704, %v2703
        %v2720 = vpack.c.b16 %v2706, %v2705
        %v2721 = vpack.c.b16 %v2708, %v2707
        %v2722 = vpack.c.b16 %v2710, %v2709
        %v2723 = vpack.c.b16 %v2712, %v2711
        %v2724 = vpack.c.b16 %v2714, %v2713
        %v2725 = vpack.c.b16 %v2716, %v2715
        %v2726 = vpack.c.b16 %v2718, %v2717
        %2735 = vmatprep.subr.bf16.mxu0 0
        %2736 = vmatpush1.bf16.msra.mxu0 %v2726
        %2737 = vmatprep.subr.bf16.mxu0 0
        %2738 = vmatpush1.bf16.msra.mxu0 %v2725
        %2739 = vmatprep.subr.bf16.mxu0 0
        %2740 = vmatpush1.bf16.msra.mxu0 %v2724
        %2741 = vmatprep.subr.bf16.mxu0 0
        %2742 = vmatpush1.bf16.msra.mxu0 %v2723
        %2743 = vmatprep.subr.bf16.mxu0 0
        %2744 = vmatpush1.bf16.msra.mxu0 %v2722
        %2745 = vmatprep.subr.bf16.mxu0 0
        %2746 = vmatpush1.bf16.msra.mxu0 %v2721
        %2747 = vmatprep.subr.bf16.mxu0 0
        %2748 = vmatpush1.bf16.msra.mxu0 %v2720
        %2749 = vmatprep.subr.bf16.mxu0 0
        %2750 = vmatpush1.bf16.msra.mxu0 %v2719
        %2751 = vmatprep.subr.bf16.mxu0 0
        %2752 = vmatpush2.bf16.msra.mxu0 0
        %2753 = vmatprep.subr.bf16.mxu0 0
        %2754 = vmatpush2.bf16.msra.mxu0 0
        %2755 = vmatprep.subr.bf16.mxu0 0
        %2756 = vmatpush2.bf16.msra.mxu0 0
        %2757 = vmatprep.subr.bf16.mxu0 0
        %2758 = vmatpush2.bf16.msra.mxu0 0
        %2759 = vmatprep.subr.bf16.mxu0 0
        %2760 = vmatpush2.bf16.msra.mxu0 0
        %2761 = vmatprep.subr.bf16.mxu0 0
        %2762 = vmatpush2.bf16.msra.mxu0 0
        %2763 = vmatprep.subr.bf16.mxu0 0
        %2764 = vmatpush2.bf16.msra.mxu0 0
        %2765 = vmatprep.subr.bf16.mxu0 0
        %2766 = vmatpush2.bf16.msra.mxu0 0
        %2767 = vmatprep.mubr.bf16.mxu0 0
        %2768 = vmatmul.mubr.bf16.gmra.mxu0 %v2685
        %v2769 = vpop.f32.mrf.mxu0
        %v2770 = vadd.f32 0.0, %v2769
        %v2771 = vpop.f32.mrf.mxu0
        %v2772 = vpop.f32.mrf.mxu0
        %v2773 = vpop.f32.mrf.mxu0
        %2774 = vdwg.mxu0
        %v2775 = vadd.f32 %v2667, %v2770
        %v2776 = vmax.f32 %v2775, 0.0
        %v2777 = vpack.c.bf16 %v2776, %v2776
        %v2794 = vunpack.c.l.b16 %v589
        %v2795 = vunpack.c.l.b16 %v590
        %v2796 = vunpack.c.l.b16 %v591
        %v2797 = vunpack.c.l.b16 %v592
        %v2798 = vunpack.c.l.b16 %v593
        %v2799 = vunpack.c.l.b16 %v594
        %v2800 = vunpack.c.l.b16 %v595
        %v2801 = vunpack.c.l.b16 %v596
        %v2802 = vunpack.c.l.b16 %v597
        %v2803 = vunpack.c.l.b16 %v598
        %v2804 = vunpack.c.l.b16 %v599
        %v2805 = vunpack.c.l.b16 %v600
        %v2806 = vunpack.c.l.b16 %v601
        %v2807 = vunpack.c.l.b16 %v602
        %v2808 = vunpack.c.l.b16 %v603
        %v2809 = vunpack.c.l.b16 %v604
        %v2810 = vpack.c.b16 %v2795, %v2794
        %v2811 = vpack.c.b16 %v2797, %v2796
        %v2812 = vpack.c.b16 %v2799, %v2798
        %v2813 = vpack.c.b16 %v2801, %v2800
        %v2814 = vpack.c.b16 %v2803, %v2802
        %v2815 = vpack.c.b16 %v2805, %v2804
        %v2816 = vpack.c.b16 %v2807, %v2806
        %v2817 = vpack.c.b16 %v2809, %v2808
        %2826 = vmatprep.subr.bf16.mxu0 0
        %2827 = vmatpush1.bf16.msra.mxu0 %v2817
        %2828 = vmatprep.subr.bf16.mxu0 0
        %2829 = vmatpush1.bf16.msra.mxu0 %v2816
        %2830 = vmatprep.subr.bf16.mxu0 0
        %2831 = vmatpush1.bf16.msra.mxu0 %v2815
        %2832 = vmatprep.subr.bf16.mxu0 0
        %2833 = vmatpush1.bf16.msra.mxu0 %v2814
        %2834 = vmatprep.subr.bf16.mxu0 0
        %2835 = vmatpush1.bf16.msra.mxu0 %v2813
        %2836 = vmatprep.subr.bf16.mxu0 0
        %2837 = vmatpush1.bf16.msra.mxu0 %v2812
        %2838 = vmatprep.subr.bf16.mxu0 0
        %2839 = vmatpush1.bf16.msra.mxu0 %v2811
        %2840 = vmatprep.subr.bf16.mxu0 0
        %2841 = vmatpush1.bf16.msra.mxu0 %v2810
        %2842 = vmatprep.subr.bf16.mxu0 0
        %2843 = vmatpush2.bf16.msra.mxu0 0
        %2844 = vmatprep.subr.bf16.mxu0 0
        %2845 = vmatpush2.bf16.msra.mxu0 0
        %2846 = vmatprep.subr.bf16.mxu0 0
        %2847 = vmatpush2.bf16.msra.mxu0 0
        %2848 = vmatprep.subr.bf16.mxu0 0
        %2849 = vmatpush2.bf16.msra.mxu0 0
        %2850 = vmatprep.subr.bf16.mxu0 0
        %2851 = vmatpush2.bf16.msra.mxu0 0
        %2852 = vmatprep.subr.bf16.mxu0 0
        %2853 = vmatpush2.bf16.msra.mxu0 0
        %2854 = vmatprep.subr.bf16.mxu0 0
        %2855 = vmatpush2.bf16.msra.mxu0 0
        %2856 = vmatprep.subr.bf16.mxu0 0
        %2857 = vmatpush2.bf16.msra.mxu0 0
        %2858 = vmatprep.mubr.bf16.mxu0 0
        %2859 = vmatmul.mubr.bf16.gmra.mxu0 %v2777
        %v2860 = vpop.f32.mrf.mxu0
        %v2861 = vadd.f32 %v624, %v2860
        %v2862 = vpop.f32.mrf.mxu0
        %v2863 = vpop.f32.mrf.mxu0
        %v2864 = vpop.f32.mrf.mxu0
        %2865 = vdwg.mxu0
        %v2866 = vmax.f32 %v2861, 0.0
        %v2867 = vpack.c.bf16 %v2866, %v2866
        %v2884 = vunpack.c.l.b16 %v605
        %v2885 = vunpack.c.l.b16 %v606
        %v2886 = vunpack.c.l.b16 %v607
        %v2887 = vunpack.c.l.b16 %v608
        %v2888 = vunpack.c.l.b16 %v609
        %v2889 = vunpack.c.l.b16 %v610
        %v2890 = vunpack.c.l.b16 %v611
        %v2891 = vunpack.c.l.b16 %v612
        %v2892 = vunpack.c.l.b16 %v613
        %v2893 = vunpack.c.l.b16 %v614
        %v2894 = vunpack.c.l.b16 %v615
        %v2895 = vunpack.c.l.b16 %v616
        %v2896 = vunpack.c.l.b16 %v617
        %v2897 = vunpack.c.l.b16 %v618
        %v2898 = vunpack.c.l.b16 %v619
        %v2899 = vunpack.c.l.b16 %v620
        %v2900 = vpack.c.b16 %v2885, %v2884
        %v2901 = vpack.c.b16 %v2887, %v2886
        %v2902 = vpack.c.b16 %v2889, %v2888
        %v2903 = vpack.c.b16 %v2891, %v2890
        %v2904 = vpack.c.b16 %v2893, %v2892
        %v2905 = vpack.c.b16 %v2895, %v2894
        %v2906 = vpack.c.b16 %v2897, %v2896
        %v2907 = vpack.c.b16 %v2899, %v2898
        %2916 = vmatprep.subr.bf16.mxu0 0
        %2917 = vmatpush1.bf16.msra.mxu0 %v2907
        %2918 = vmatprep.subr.bf16.mxu0 0
        %2919 = vmatpush1.bf16.msra.mxu0 %v2906
        %2920 = vmatprep.subr.bf16.mxu0 0
        %2921 = vmatpush1.bf16.msra.mxu0 %v2905
        %2922 = vmatprep.subr.bf16.mxu0 0
        %2923 = vmatpush1.bf16.msra.mxu0 %v2904
        %2924 = vmatprep.subr.bf16.mxu0 0
        %2925 = vmatpush1.bf16.msra.mxu0 %v2903
        %2926 = vmatprep.subr.bf16.mxu0 0
        %2927 = vmatpush1.bf16.msra.mxu0 %v2902
        %2928 = vmatprep.subr.bf16.mxu0 0
        %2929 = vmatpush1.bf16.msra.mxu0 %v2901
        %2930 = vmatprep.subr.bf16.mxu0 0
        %2931 = vmatpush1.bf16.msra.mxu0 %v2900
        %2932 = vmatprep.subr.bf16.mxu0 0
        %2933 = vmatpush2.bf16.msra.mxu0 0
        %2934 = vmatprep.subr.bf16.mxu0 0
        %2935 = vmatpush2.bf16.msra.mxu0 0
        %2936 = vmatprep.subr.bf16.mxu0 0
        %2937 = vmatpush2.bf16.msra.mxu0 0
        %2938 = vmatprep.subr.bf16.mxu0 0
        %2939 = vmatpush2.bf16.msra.mxu0 0
        %2940 = vmatprep.subr.bf16.mxu0 0
        %2941 = vmatpush2.bf16.msra.mxu0 0
        %2942 = vmatprep.subr.bf16.mxu0 0
        %2943 = vmatpush2.bf16.msra.mxu0 0
        %2944 = vmatprep.subr.bf16.mxu0 0
        %2945 = vmatpush2.bf16.msra.mxu0 0
        %2946 = vmatprep.subr.bf16.mxu0 0
        %2947 = vmatpush2.bf16.msra.mxu0 0
        %2948 = vmatprep.mubr.bf16.mxu0 0
        %2949 = vmatmul.mubr.bf16.gmra.mxu0 %v2867
        %v2950 = vpop.f32.mrf.mxu0
        %v2951 = vadd.f32 %v625, %v2950
        %v2952 = vpop.f32.mrf.mxu0
        %v2953 = vpop.f32.mrf.mxu0
        %v2954 = vpop.f32.mrf.mxu0
        %2955 = vdwg.mxu0
        %2956 = vst [vmem:[%s422] sm:$0x1] %v2951
        %s2957 = sand.u32 %s271, 1
        %s2958 = scalar_lea.sflag [#allocation4], %s2957
        %s2959 = sand.u32 %s271, 1
        %s2960 = scalar_lea.vmem [#allocation8], %s2959
        // Predicated region
        $region77: #{net_forward.1} parent=63 // pred_check
          %p2961 = pneg %p281
        $region78: #{net_forward.1} parent=63 // pred_check_branch
          %2963 = sbr.rel (%p2961) target = $region80
        $region79: #{net_forward.1} parent=63 // pred_region
          %s2965 = ssub.s32 16, 16
          %2966 = vsyncadd %s2958, %s2965
          %s2967 = smul.addr %s27, 16
          %s2968 = scalar_lea.hbm %s11, %s2967
          %s2970 = sshll.u32 %s2960, 4
          %s2971 = int_to_ptr.vmem [resolvable:$true] %s2970
          %2973 = dma.vmem_to_hbm [thread:$0]  %s2971, 16, %s2968, %s2958
        $region80: #{net_forward.1} parent=63 // pred_fallthru
          _
      $region64: #{net_forward.1} parent=5 // pred_fallthru
        _
      %p2974 = scmp.le.s32.totalorder 2, %s22
      // Predicated region
      $region81: #{net_forward.1} parent=5 // pred_check
        %p2975 = pneg %p2974
      $region82: #{net_forward.1} parent=5 // pred_check_branch
        %2977 = sbr.rel (%p2975) target = $region84
      $region83: #{net_forward.1} parent=5 // pred_region
        %s2978 = ssub.s32 %s22, 2
        // Predicated region
        $region85: #{net_forward.1} parent=83 // pred_check
          %p2979 = pneg %p287
        $region86: #{net_forward.1} parent=83 // pred_check_branch
          %2981 = sbr.rel (%p2979) target = $region88
        $region87: #{net_forward.1} parent=83 // pred_region
          %s2982 = sand.u32 %s272, 1
          %s2983 = scalar_lea.sflag [#allocation4], %s2982
          %s2984 = sand.u32 %s272, 1
          %s2985 = scalar_lea.vmem [#allocation8], %s2984
          %2986 = dma.done %s2983, 16
        $region88: #{net_forward.1} parent=83 // pred_fallthru
          _
      $region84: #{net_forward.1} parent=5 // pred_fallthru
        _
    $region6: #{net_forward.1} parent=1 // loop_footer
      %s26 = sadd.s32 1, %s22
    $region7: #{net_forward.1} parent=1 // loop_footer_branch
      %21 = sbr.rel target = $region3
    $region8: #{net_forward.1} parent=1 // loop_exit
      _
    %2987 = vsyncpa [#allocation3], 1
    %s2988 = scalar_lea.sflag [#allocation3], 1
    %2989 = vsyncpa %s2988, 1
    %2990 = vsyncpa [#allocation6], 1
    %2991 = vsyncpa [#allocation4], 1
    %s2992 = scalar_lea.sflag [#allocation4], 1
    %2993 = vsyncpa %s2992, 1

</llo_original>
